<compile_context>
chip_gen: v5e
topology: v5e:2x2
jax: 0.10.0
libtpu: 0.0.40
codegen_flags: <defaults>
</compile_context>

<pallas_src>
import jax
import jax.numpy as jnp
from jax.experimental import pallas as pl
from jax.experimental.pallas import tpu as pltpu

VOCAB_SIZE = 31650
EMBED_DIM = 64
NUM_CLASS = 2
CONV_K = 15
CONV_STRIDE = 7
CONV1_PAD = 56
CIN = 64                        # conv input channels (both stages)
COUT = 64                       # channels per gate (A or B); fused out = 128
GROUP = CONV_STRIDE             # 7 time steps per grouped row
GLANE = GROUP * CIN             # 448 lanes per grouped row


def _round_up(x, m):
    return (x + m - 1) // m * m


# ---------------------------------------------------------------------------
# Pallas kernel: fused Conv1d(A)+Conv1d(B) (k=15, s=7) + GLU for one row tile.
# ---------------------------------------------------------------------------
def glu_conv_kernel(x_ref, w0_ref, w1_ref, w2_ref, b_ref, o_ref):
    """x_ref : (1, G_pad, 448) grouped activation (VMEM-resident per batch), bf16
       w0/w1 : (448, 128) taps 0-6 / taps 7-13 (A|B fused on lanes), bf16
       w2    : (64, 128)  tap 14, bf16
       b_ref : (1, 128) f32 fused bias
       o_ref : (1, tm, 64) bf16 GLU output tile."""
    tm = o_ref.shape[1]
    t0 = pl.multiple_of(pl.program_id(1) * tm, 8)
    # Aligned dynamic window of tm+8 grouped rows; the +1/+2 row shifts are
    # static slices of the upcast value (robust lowering, no strided loads).
    xw = x_ref[0, pl.ds(t0, tm + 8), :].astype(jnp.float32)
    x0 = xw[:tm].astype(jnp.bfloat16)                    # groups t
    x1 = xw[1:tm + 1].astype(jnp.bfloat16)               # groups t+1
    x2 = xw[2:tm + 2, :CIN].astype(jnp.bfloat16)         # first row of groups t+2

    acc = jnp.dot(x0, w0_ref[...], preferred_element_type=jnp.float32)
    acc += jnp.dot(x1, w1_ref[...], preferred_element_type=jnp.float32)
    acc += jnp.dot(x2, w2_ref[...], preferred_element_type=jnp.float32)
    ab = acc + b_ref[...]                                 # (tm, 128) f32
    # GLU: A * sigmoid(B)
    o_ref[0] = (ab[:, :COUT] * jax.nn.sigmoid(ab[:, COUT:])).astype(o_ref.dtype)


# ---------------------------------------------------------------------------
# Wrapper: one gated-conv stage (Conv1d A + Conv1d B + GLU)
# ---------------------------------------------------------------------------
def glu_conv_stage(x, w0, w1, w2, b, conv_pad, tm=512):
    """x: (B, L, 64) bf16 channels-last.  Returns (B, L_out, 64) bf16."""
    B, L, C = x.shape
    L_out = (L + 2 * conv_pad - CONV_K) // CONV_STRIDE + 1
    assert L_out >= 1, "sequence too short for this conv stage"
    tm = min(tm, _round_up(L_out, 8))        # clamp for tiny shapes
    t_pad = _round_up(L_out, tm)
    g_pad = t_pad + 8                        # +8 groups so the (tm+8) window stays in-bounds
    rows = GROUP * g_pad

    # Compact grouped activation: (B, rows, 64) -> (B, g_pad, 448).  One cheap
    # XLA pad/reshape pass; no 15x / 2.1x im2col expansion in HBM.
    xp = jnp.pad(x, ((0, 0), (conv_pad, rows - L - conv_pad), (0, 0)))
    xg = xp.reshape(B, g_pad, GROUP * C)

    # VMEM budget: double-buffered resident activation + resident weights +
    # output tile + in-kernel intermediates (window upcast, shifted copies, acc).
    vmem_limit = int(
        2 * (g_pad * GROUP * C * 2)
        + 2 * ((2 * GROUP * C + C) * 2 * COUT * 2 + 2 * COUT * 4)
        + 2 * (tm * COUT * 2)
        + (8 << 20) + 32 * tm * GROUP * C)
    vmem_limit = min(vmem_limit, 48 << 20)
    # TODO(synk): for very long sequences the whole-batch-resident activation
    # should become a row-window DMA (manual double-buffer) to bound VMEM.

    out = pl.pallas_call(
        glu_conv_kernel,
        out_shape=jax.ShapeDtypeStruct((B, t_pad, COUT), jnp.bfloat16),
        grid=(B, t_pad // tm),
        in_specs=[pl.BlockSpec((1, g_pad, GROUP * C), lambda bi, ti: (bi, 0, 0)),
                  pl.BlockSpec((GROUP * C, 2 * COUT), lambda bi, ti: (0, 0)),
                  pl.BlockSpec((GROUP * C, 2 * COUT), lambda bi, ti: (0, 0)),
                  pl.BlockSpec((C, 2 * COUT), lambda bi, ti: (0, 0)),
                  pl.BlockSpec((1, 2 * COUT), lambda bi, ti: (0, 0))],
        out_specs=pl.BlockSpec((1, tm, COUT), lambda bi, ti: (bi, ti, 0)),
        compiler_params=pltpu.CompilerParams(
            dimension_semantics=("parallel", "parallel"),
            vmem_limit_bytes=vmem_limit),
    )(xg, w0, w1, w2, b)
    return out[:, :L_out, :]


# ---------------------------------------------------------------------------
# Parameter setup (torch-equivalent init) and inference-weight preparation
# ---------------------------------------------------------------------------
def conv_w_to_taps(w_ock):
    """torch Conv1d weight (O, Cin, K) -> (K, Cin, O)."""
    return jnp.transpose(w_ock, (2, 1, 0))


def fuse_gate_weights(wa, ba, wb, bb):
    """Fuse A/B convs into grouped matmul weights (A on lanes 0-63, B on 64-127):
       W0 (taps 0-6), W1 (taps 7-13): (7*Cin, 128);  W2 (tap 14): (Cin, 128)."""
    wt = jnp.concatenate([conv_w_to_taps(wa), conv_w_to_taps(wb)], axis=-1)  # (15, Cin, 128)
    _, cin, o2 = wt.shape
    w0 = wt[0:GROUP].reshape(GROUP * cin, o2).astype(jnp.bfloat16)
    w1 = wt[GROUP:2 * GROUP].reshape(GROUP * cin, o2).astype(jnp.bfloat16)
    w2 = wt[2 * GROUP].astype(jnp.bfloat16)
    bias = jnp.concatenate([ba, bb]).reshape(1, o2).astype(jnp.float32)
    return w0, w1, w2, bias


def init_params(key):
    """Torch-equivalent init (Embedding ~ N(0,1); Conv/Linear ~ U(+-1/sqrt(fan_in)))."""
    ks = jax.random.split(key, 16)

    def uni(k, shape, fan_in):
        bound = 1.0 / jnp.sqrt(jnp.float32(fan_in))
        return jax.random.uniform(k, shape, jnp.float32, -bound, bound)

    p = {}
    p["emb"] = jax.random.normal(ks[0], (VOCAB_SIZE, EMBED_DIM), jnp.float32)
    fan_c = CIN * CONV_K
    p["WA1"] = uni(ks[1], (64, EMBED_DIM, CONV_K), fan_c)
    p["bA1"] = uni(ks[2], (64,), fan_c)
    p["WB1"] = uni(ks[3], (64, EMBED_DIM, CONV_K), fan_c)
    p["bB1"] = uni(ks[4], (64,), fan_c)
    p["WA2"] = uni(ks[5], (64, 64, CONV_K), fan_c)
    p["bA2"] = uni(ks[6], (64,), fan_c)
    p["WB2"] = uni(ks[7], (64, 64, CONV_K), fan_c)
    p["bB2"] = uni(ks[8], (64,), fan_c)
    p["W1"] = uni(ks[9], (64, 128), 64)
    p["b1"] = uni(ks[10], (128,), 64)
    p["W2"] = uni(ks[11], (128, NUM_CLASS), 128)
    p["b2"] = uni(ks[12], (NUM_CLASS,), 128)
    return p


def prepare_inference_params(p):
    q = {}
    q["emb"] = p["emb"].astype(jnp.bfloat16)
    q["c1"] = fuse_gate_weights(p["WA1"], p["bA1"], p["WB1"], p["bB1"])
    q["c2"] = fuse_gate_weights(p["WA2"], p["bA2"], p["WB2"], p["bB2"])
    # Linear(64->128) then Linear(128->2) with no activation between: exact fold.
    q["Wf"] = (p["W1"] @ p["W2"]).astype(jnp.float32)                  # (64, 2)
    q["bf"] = (p["b1"] @ p["W2"] + p["b2"]).astype(jnp.float32)        # (2,)
    return q


# ---------------------------------------------------------------------------
# Forward pass
# ---------------------------------------------------------------------------
def gcnn_forward(params, word_index):
    # TODO(synk): on v5e the embedding gather could be a scalar-prefetch Pallas
    # kernel fused with the stage-1 DMA; kept as an XLA gather here.
    emb = jnp.take(params["emb"], word_index, axis=0)              # (B, L, 64) bf16

    # gated conv block 1: Conv1d(64->64, k=15, s=7, pad=56) x2 + GLU
    h1 = glu_conv_stage(emb, *params["c1"], conv_pad=CONV1_PAD)    # (B, L1, 64)
    # gated conv block 2: Conv1d(64->64, k=15, s=7, pad=0) x2 + GLU
    h2 = glu_conv_stage(h1, *params["c2"], conv_pad=0)             # (B, L2, 64)

    # mean pool over time + folded Linear(64->2): tiny, left in XLA (the
    # dedicated head pallas_call was pure overhead).
    pool = jnp.mean(h2.astype(jnp.float32), axis=1)                # (B, 64)
    return pool @ params["Wf"] + params["bf"]                      # (B, 2) f32


if __name__ == "__main__":
    key = jax.random.PRNGKey(0)
    pkey, dkey = jax.random.split(key)
    params = prepare_inference_params(init_params(pkey))

    B, L = 2, 128  # long enough that both stride-7 convs produce valid lengths
    word_index = jax.random.randint(dkey, (B, L), 0, VOCAB_SIZE, dtype=jnp.int32)

    logits = jax.jit(gcnn_forward)(params, word_index)
    jax.block_until_ready(logits)
    assert logits.shape == (B, NUM_CLASS), logits.shape
    assert logits.dtype == jnp.float32
    assert bool(jnp.all(jnp.isfinite(logits)))
    print("KERNEL_OK")
</pallas_src>

<mosaic_0001>
module attributes {stable_mosaic.version = 11 : i64} {
  func.func @glu_conv_kernel(%arg0: i32, %arg1: i32, %arg2: memref<1x48x448xbf16, #tpu.memory_space<vmem>>, %arg3: memref<448x128xbf16, #tpu.memory_space<vmem>>, %arg4: memref<448x128xbf16, #tpu.memory_space<vmem>>, %arg5: memref<64x128xbf16, #tpu.memory_space<vmem>>, %arg6: memref<1x128xf32, #tpu.memory_space<vmem>>, %arg7: memref<1x40x64xbf16, #tpu.memory_space<vmem>>) attributes {dimension_semantics = [#tpu.dimension_semantics<parallel>, #tpu.dimension_semantics<parallel>], iteration_bounds = array<i64: 2, 1>, scalar_prefetch = 0 : i64, scratch_operands = 0 : i64, tpu.core_type = #tpu.core_type<tc>, window_params = [{transform_indices = @transform_0, window_bounds = array<i64: 1, 48, 448>}, {pipeline_mode = #tpu.pipeline_mode<synchronous>, transform_indices = @transform_1, window_bounds = array<i64: 448, 128>}, {pipeline_mode = #tpu.pipeline_mode<synchronous>, transform_indices = @transform_2, window_bounds = array<i64: 448, 128>}, {pipeline_mode = #tpu.pipeline_mode<synchronous>, transform_indices = @transform_3, window_bounds = array<i64: 64, 128>}, {pipeline_mode = #tpu.pipeline_mode<synchronous>, transform_indices = @transform_4, window_bounds = array<i64: 1, 128>}, {transform_indices = @transform_5, window_bounds = array<i64: 1, 40, 64>}]} {
    %c40_i32 = arith.constant 40 : i32
    %0 = arith.muli %arg1, %c40_i32 : i32
    %1 = tpu.assume_multiple %0, 8 : i32
    %c0 = arith.constant 0 : index
    %2 = arith.index_cast %1 : i32 to index
    %c0_0 = arith.constant 0 : index
    %3 = vector.load %arg2[%c0, %2, %c0_0] : memref<1x48x448xbf16, #tpu.memory_space<vmem>>, vector<1x48x448xbf16>
    %4 = vector.shape_cast %3 : vector<1x48x448xbf16> to vector<48x448xbf16>
    %5 = arith.extf %4 : vector<48x448xbf16> to vector<48x448xf32>
    %6 = vector.extract_strided_slice %5 {offsets = [0, 0], sizes = [40, 448], strides = [1, 1]} : vector<48x448xf32> to vector<40x448xf32>
    %7 = arith.truncf %6 : vector<40x448xf32> to vector<40x448xbf16>
    %8 = vector.extract_strided_slice %5 {offsets = [1, 0], sizes = [40, 448], strides = [1, 1]} : vector<48x448xf32> to vector<40x448xf32>
    %9 = arith.truncf %8 : vector<40x448xf32> to vector<40x448xbf16>
    %10 = vector.extract_strided_slice %5 {offsets = [2, 0], sizes = [40, 64], strides = [1, 1]} : vector<48x448xf32> to vector<40x64xf32>
    %11 = arith.truncf %10 : vector<40x64xf32> to vector<40x64xbf16>
    %c0_1 = arith.constant 0 : index
    %c0_2 = arith.constant 0 : index
    %12 = vector.load %arg3[%c0_1, %c0_2] : memref<448x128xbf16, #tpu.memory_space<vmem>>, vector<448x128xbf16>
    %cst = arith.constant dense<0.000000e+00> : vector<40x128xf32>
    %13 = tpu.matmul %7, %12, %cst {dimension_numbers = #tpu.dot_dimension_numbers<[1], [0], [0], [1], [0, 0, 1, 1], [], []>} : vector<40x448xbf16>, vector<448x128xbf16>, vector<40x128xf32> -> vector<40x128xf32>
    %c0_3 = arith.constant 0 : index
    %c0_4 = arith.constant 0 : index
    %14 = vector.load %arg4[%c0_3, %c0_4] : memref<448x128xbf16, #tpu.memory_space<vmem>>, vector<448x128xbf16>
    %cst_5 = arith.constant dense<0.000000e+00> : vector<40x128xf32>
    %15 = tpu.matmul %9, %14, %cst_5 {dimension_numbers = #tpu.dot_dimension_numbers<[1], [0], [0], [1], [0, 0, 1, 1], [], []>} : vector<40x448xbf16>, vector<448x128xbf16>, vector<40x128xf32> -> vector<40x128xf32>
    %16 = arith.addf %13, %15 : vector<40x128xf32>
    %c0_6 = arith.constant 0 : index
    %c0_7 = arith.constant 0 : index
    %17 = vector.load %arg5[%c0_6, %c0_7] : memref<64x128xbf16, #tpu.memory_space<vmem>>, vector<64x128xbf16>
    %cst_8 = arith.constant dense<0.000000e+00> : vector<40x128xf32>
    %18 = tpu.matmul %11, %17, %cst_8 {dimension_numbers = #tpu.dot_dimension_numbers<[1], [0], [0], [1], [0, 0, 1, 1], [], []>} : vector<40x64xbf16>, vector<64x128xbf16>, vector<40x128xf32> -> vector<40x128xf32>
    %19 = arith.addf %16, %18 : vector<40x128xf32>
    %c0_9 = arith.constant 0 : index
    %c0_10 = arith.constant 0 : index
    %20 = vector.load %arg6[%c0_9, %c0_10] : memref<1x128xf32, #tpu.memory_space<vmem>>, vector<1x128xf32>
    %21 = vector.broadcast %20 : vector<1x128xf32> to vector<40x128xf32>
    %22 = arith.addf %19, %21 : vector<40x128xf32>
    %23 = vector.extract_strided_slice %22 {offsets = [0, 0], sizes = [40, 64], strides = [1, 1]} : vector<40x128xf32> to vector<40x64xf32>
    %24 = vector.extract_strided_slice %22 {offsets = [0, 64], sizes = [40, 64], strides = [1, 1]} : vector<40x128xf32> to vector<40x64xf32>
    %25 = arith.negf %24 : vector<40x64xf32>
    %26 = math.exp %25 : vector<40x64xf32>
    %cst_11 = arith.constant 1.000000e+00 : f32
    %27 = vector.broadcast %cst_11 : f32 to vector<40x64xf32>
    %28 = arith.addf %27, %26 : vector<40x64xf32>
    %29 = arith.divf %27, %28 : vector<40x64xf32>
    %30 = arith.mulf %23, %29 : vector<40x64xf32>
    %31 = arith.truncf %30 : vector<40x64xf32> to vector<40x64xbf16>
    %c0_12 = arith.constant 0 : index
    %c0_13 = arith.constant 0 : index
    %c0_14 = arith.constant 0 : index
    %32 = vector.load %arg7[%c0_12, %c0_13, %c0_14] : memref<1x40x64xbf16, #tpu.memory_space<vmem>>, vector<1x40x64xbf16>
    %33 = vector.shape_cast %32 : vector<1x40x64xbf16> to vector<40x64xbf16>
    %34 = vector.shape_cast %31 : vector<40x64xbf16> to vector<1x40x64xbf16>
    tpu.vector_store %arg7[%c0_12, %c0_13, %c0_14], %34 {strides = array<i32>} : memref<1x40x64xbf16, #tpu.memory_space<vmem>>, vector<1x40x64xbf16>,
    return
  }
  func.func @transform_0(%arg0: i32, %arg1: i32) -> (i32, i32, i32) {
    %c0_i32 = arith.constant 0 : i32
    %c0_i32_0 = arith.constant 0 : i32
    %c0_i32_1 = arith.constant 0 : i32
    return %arg0, %c0_i32, %c0_i32_0 : i32, i32, i32
  }
  func.func @transform_1(%arg0: i32, %arg1: i32) -> (i32, i32) {
    %c0_i32 = arith.constant 0 : i32
    %c0_i32_0 = arith.constant 0 : i32
    %c0_i32_1 = arith.constant 0 : i32
    return %c0_i32, %c0_i32_0 : i32, i32
  }
  func.func @transform_2(%arg0: i32, %arg1: i32) -> (i32, i32) {
    %c0_i32 = arith.constant 0 : i32
    %c0_i32_0 = arith.constant 0 : i32
    %c0_i32_1 = arith.constant 0 : i32
    return %c0_i32, %c0_i32_0 : i32, i32
  }
  func.func @transform_3(%arg0: i32, %arg1: i32) -> (i32, i32) {
    %c0_i32 = arith.constant 0 : i32
    %c0_i32_0 = arith.constant 0 : i32
    %c0_i32_1 = arith.constant 0 : i32
    return %c0_i32, %c0_i32_0 : i32, i32
  }
  func.func @transform_4(%arg0: i32, %arg1: i32) -> (i32, i32) {
    %c0_i32 = arith.constant 0 : i32
    %c0_i32_0 = arith.constant 0 : i32
    %c0_i32_1 = arith.constant 0 : i32
    return %c0_i32, %c0_i32_0 : i32, i32
  }
  func.func @transform_5(%arg0: i32, %arg1: i32) -> (i32, i32, i32) {
    %c0_i32 = arith.constant 0 : i32
    %c0_i32_0 = arith.constant 0 : i32
    return %arg0, %arg1, %c0_i32 : i32, i32, i32
  }
}

module attributes {stable_mosaic.version = 11 : i64} {
  func.func @glu_conv_kernel(%arg0: i32, %arg1: i32, %arg2: memref<1x16x448xbf16, #tpu.memory_space<vmem>>, %arg3: memref<448x128xbf16, #tpu.memory_space<vmem>>, %arg4: memref<448x128xbf16, #tpu.memory_space<vmem>>, %arg5: memref<64x128xbf16, #tpu.memory_space<vmem>>, %arg6: memref<1x128xf32, #tpu.memory_space<vmem>>, %arg7: memref<1x8x64xbf16, #tpu.memory_space<vmem>>) attributes {dimension_semantics = [#tpu.dimension_semantics<parallel>, #tpu.dimension_semantics<parallel>], iteration_bounds = array<i64: 2, 1>, scalar_prefetch = 0 : i64, scratch_operands = 0 : i64, tpu.core_type = #tpu.core_type<tc>, window_params = [{transform_indices = @transform_0, window_bounds = array<i64: 1, 16, 448>}, {pipeline_mode = #tpu.pipeline_mode<synchronous>, transform_indices = @transform_1, window_bounds = array<i64: 448, 128>}, {pipeline_mode = #tpu.pipeline_mode<synchronous>, transform_indices = @transform_2, window_bounds = array<i64: 448, 128>}, {pipeline_mode = #tpu.pipeline_mode<synchronous>, transform_indices = @transform_3, window_bounds = array<i64: 64, 128>}, {pipeline_mode = #tpu.pipeline_mode<synchronous>, transform_indices = @transform_4, window_bounds = array<i64: 1, 128>}, {transform_indices = @transform_5, window_bounds = array<i64: 1, 8, 64>}]} {
    %c8_i32 = arith.constant 8 : i32
    %0 = arith.muli %arg1, %c8_i32 : i32
    %1 = tpu.assume_multiple %0, 8 : i32
    %c0 = arith.constant 0 : index
    %2 = arith.index_cast %1 : i32 to index
    %c0_0 = arith.constant 0 : index
    %3 = vector.load %arg2[%c0, %2, %c0_0] : memref<1x16x448xbf16, #tpu.memory_space<vmem>>, vector<1x16x448xbf16>
    %4 = vector.shape_cast %3 : vector<1x16x448xbf16> to vector<16x448xbf16>
    %5 = arith.extf %4 : vector<16x448xbf16> to vector<16x448xf32>
    %6 = vector.extract_strided_slice %5 {offsets = [0, 0], sizes = [8, 448], strides = [1, 1]} : vector<16x448xf32> to vector<8x448xf32>
    %7 = arith.truncf %6 : vector<8x448xf32> to vector<8x448xbf16>
    %8 = vector.extract_strided_slice %5 {offsets = [1, 0], sizes = [8, 448], strides = [1, 1]} : vector<16x448xf32> to vector<8x448xf32>
    %9 = arith.truncf %8 : vector<8x448xf32> to vector<8x448xbf16>
    %10 = vector.extract_strided_slice %5 {offsets = [2, 0], sizes = [8, 64], strides = [1, 1]} : vector<16x448xf32> to vector<8x64xf32>
    %11 = arith.truncf %10 : vector<8x64xf32> to vector<8x64xbf16>
    %c0_1 = arith.constant 0 : index
    %c0_2 = arith.constant 0 : index
    %12 = vector.load %arg3[%c0_1, %c0_2] : memref<448x128xbf16, #tpu.memory_space<vmem>>, vector<448x128xbf16>
    %cst = arith.constant dense<0.000000e+00> : vector<8x128xf32>
    %13 = tpu.matmul %7, %12, %cst {dimension_numbers = #tpu.dot_dimension_numbers<[1], [0], [0], [1], [0, 0, 1, 1], [], []>} : vector<8x448xbf16>, vector<448x128xbf16>, vector<8x128xf32> -> vector<8x128xf32>
    %c0_3 = arith.constant 0 : index
    %c0_4 = arith.constant 0 : index
    %14 = vector.load %arg4[%c0_3, %c0_4] : memref<448x128xbf16, #tpu.memory_space<vmem>>, vector<448x128xbf16>
    %cst_5 = arith.constant dense<0.000000e+00> : vector<8x128xf32>
    %15 = tpu.matmul %9, %14, %cst_5 {dimension_numbers = #tpu.dot_dimension_numbers<[1], [0], [0], [1], [0, 0, 1, 1], [], []>} : vector<8x448xbf16>, vector<448x128xbf16>, vector<8x128xf32> -> vector<8x128xf32>
    %16 = arith.addf %13, %15 : vector<8x128xf32>
    %c0_6 = arith.constant 0 : index
    %c0_7 = arith.constant 0 : index
    %17 = vector.load %arg5[%c0_6, %c0_7] : memref<64x128xbf16, #tpu.memory_space<vmem>>, vector<64x128xbf16>
    %cst_8 = arith.constant dense<0.000000e+00> : vector<8x128xf32>
    %18 = tpu.matmul %11, %17, %cst_8 {dimension_numbers = #tpu.dot_dimension_numbers<[1], [0], [0], [1], [0, 0, 1, 1], [], []>} : vector<8x64xbf16>, vector<64x128xbf16>, vector<8x128xf32> -> vector<8x128xf32>
    %19 = arith.addf %16, %18 : vector<8x128xf32>
    %c0_9 = arith.constant 0 : index
    %c0_10 = arith.constant 0 : index
    %20 = vector.load %arg6[%c0_9, %c0_10] : memref<1x128xf32, #tpu.memory_space<vmem>>, vector<1x128xf32>
    %21 = vector.broadcast %20 : vector<1x128xf32> to vector<8x128xf32>
    %22 = arith.addf %19, %21 : vector<8x128xf32>
    %23 = vector.extract_strided_slice %22 {offsets = [0, 0], sizes = [8, 64], strides = [1, 1]} : vector<8x128xf32> to vector<8x64xf32>
    %24 = vector.extract_strided_slice %22 {offsets = [0, 64], sizes = [8, 64], strides = [1, 1]} : vector<8x128xf32> to vector<8x64xf32>
    %25 = arith.negf %24 : vector<8x64xf32>
    %26 = math.exp %25 : vector<8x64xf32>
    %cst_11 = arith.constant 1.000000e+00 : f32
    %27 = vector.broadcast %cst_11 : f32 to vector<8x64xf32>
    %28 = arith.addf %27, %26 : vector<8x64xf32>
    %29 = arith.divf %27, %28 : vector<8x64xf32>
    %30 = arith.mulf %23, %29 : vector<8x64xf32>
    %31 = arith.truncf %30 : vector<8x64xf32> to vector<8x64xbf16>
    %c0_12 = arith.constant 0 : index
    %c0_13 = arith.constant 0 : index
    %c0_14 = arith.constant 0 : index
    %32 = vector.load %arg7[%c0_12, %c0_13, %c0_14] : memref<1x8x64xbf16, #tpu.memory_space<vmem>>, vector<1x8x64xbf16>
    %33 = vector.shape_cast %32 : vector<1x8x64xbf16> to vector<8x64xbf16>
    %34 = vector.shape_cast %31 : vector<8x64xbf16> to vector<1x8x64xbf16>
    tpu.vector_store %arg7[%c0_12, %c0_13, %c0_14], %34 {strides = array<i32>} : memref<1x8x64xbf16, #tpu.memory_space<vmem>>, vector<1x8x64xbf16>,
    return
  }
  func.func @transform_0(%arg0: i32, %arg1: i32) -> (i32, i32, i32) {
    %c0_i32 = arith.constant 0 : i32
    %c0_i32_0 = arith.constant 0 : i32
    %c0_i32_1 = arith.constant 0 : i32
    return %arg0, %c0_i32, %c0_i32_0 : i32, i32, i32
  }
  func.func @transform_1(%arg0: i32, %arg1: i32) -> (i32, i32) {
    %c0_i32 = arith.constant 0 : i32
    %c0_i32_0 = arith.constant 0 : i32
    %c0_i32_1 = arith.constant 0 : i32
    return %c0_i32, %c0_i32_0 : i32, i32
  }
  func.func @transform_2(%arg0: i32, %arg1: i32) -> (i32, i32) {
    %c0_i32 = arith.constant 0 : i32
    %c0_i32_0 = arith.constant 0 : i32
    %c0_i32_1 = arith.constant 0 : i32
    return %c0_i32, %c0_i32_0 : i32, i32
  }
  func.func @transform_3(%arg0: i32, %arg1: i32) -> (i32, i32) {
    %c0_i32 = arith.constant 0 : i32
    %c0_i32_0 = arith.constant 0 : i32
    %c0_i32_1 = arith.constant 0 : i32
    return %c0_i32, %c0_i32_0 : i32, i32
  }
  func.func @transform_4(%arg0: i32, %arg1: i32) -> (i32, i32) {
    %c0_i32 = arith.constant 0 : i32
    %c0_i32_0 = arith.constant 0 : i32
    %c0_i32_1 = arith.constant 0 : i32
    return %c0_i32, %c0_i32_0 : i32, i32
  }
  func.func @transform_5(%arg0: i32, %arg1: i32) -> (i32, i32, i32) {
    %c0_i32 = arith.constant 0 : i32
    %c0_i32_0 = arith.constant 0 : i32
    return %arg0, %arg1, %c0_i32 : i32, i32, i32
  }
}

</mosaic_0001>

<llo_original>
// kernel: gcnn_forward.2
$region0: #{gcnn_forward.2}
  #allocation0 [shape = 'u32[]', space=smem, size = 0x4, offset = 0x4, fixed_abs, tag = 'smem constant byte address 0x4 - core index']
  #allocation1 [shape = 'u32[72,128]{1,0:T(1,128)}', space=vmem, size = 0x9000, scoped, tag = 'internal scratch']
  %s0 = inlined_call_operand.vmem [shape: bf16[2,48,448], index: 0, kind: input, shape index: {}]
  %s1 = inlined_call_operand.vmem [shape: bf16[448,128], index: 1, kind: input, shape index: {}]
  %s2 = inlined_call_operand.vmem [shape: bf16[448,128], index: 2, kind: input, shape index: {}]
  %s3 = inlined_call_operand.vmem [shape: bf16[64,128], index: 3, kind: input, shape index: {}]
  %s4 = inlined_call_operand.vmem [shape: f32[1,128], index: 4, kind: input, shape index: {}]
  %s5 = inlined_call_operand.vmem [shape: bf16[2,40,64], index: 5, kind: output, shape index: {}]
  %s6 = sld [smem:[#allocation0]]
  $region53: #{gcnn_forward.2} parent=0
    _
  %s8 = ssub.s32 1, %s6
  %s9 = scalar_select 0, %s8, %s6
  loop: start=0, step=1, limit=4
  $region2: #{gcnn_forward.2} parent=0 // loop_pre_header
    _
  $region3: #{gcnn_forward.2} parent=0 // loop_header
    %s11 = sphi 0, %s15
    %p12 = scmp.ge.s32.totalorder %s11, 4
    %s18 = sphi 0, %s30
    %s19 = sphi 0, %s26
    %s20 = sphi 0, %s18
    %s21 = sphi 0, %s19
    %s22 = sphi 0, %s20
    %s23 = sphi 0, %s21
    %s33 = sphi 0, %s35
    %s36 = sphi 0, %s33
    %s37 = sphi 0, %s36
    %s53 = sphi 0, %s37
    %s57 = sphi 0, %s57
    %s59 = sphi 0, %s57
    %s60 = sphi 0, %s59
    %s74 = sphi 0, %s60
    %s78 = sphi 0, %s78
    %s80 = sphi 0, %s78
    %s81 = sphi 0, %s80
    %s95 = sphi 0, %s81
    %s99 = sphi 0, %s99
    %s101 = sphi 0, %s99
    %s102 = sphi 0, %s101
    %s116 = sphi 0, %s102
    %s120 = sphi 0, %s120
    %s122 = sphi 0, %s120
    %s123 = sphi 0, %s122
    %s137 = sphi 0, %s123
    %s145 = sphi 0, %s147
    %s148 = sphi 0, %s145
    %s149 = sphi 0, %s148
    %s165 = sphi 0, %s149
  $region4: #{gcnn_forward.2} parent=0 // loop_header_branch
    %14 = sbr.rel (%p12) target = $region8
  $region5: #{gcnn_forward.2} parent=0 // loop_body
    %s16 = ssub.s32 %s11, 1
    %s17 = ssub.s32 %s11, 2
    %s24 = sadd.s32 1, %s19
    %p25 = scmp.ge.s32.totalorder %s24, 1
    %s26 = scalar_select %p25, 0, %s24
    %s27 = sadd.s32 1, %s18
    %s28 = scalar_select %p25, %s27, %s18
    %p29 = scmp.ge.s32.totalorder %s28, 2
    %s30 = scalar_select %p29, 0, %s28
    %s31 = ssub.s32 %s18, %s30
    %p32 = scmp.eq.s32.totalorder %s31, 0
    %s34 = sadd.s32 %s33, 1
    %s35 = scalar_select %p32, %s33, %s34
    %p38 = pneg %p32
    %p39 = scmp.eq.s32.totalorder %s11, 1
    %p40 = por %p38, %p39
    %p41 = scmp.ne.s32.totalorder %s33, %s36
    %p42 = scmp.eq.s32.totalorder %s11, 0
    %p43 = por %p41, %p42
    %p44 = scmp.ne.s32.totalorder %s33, %s36
    %p45 = scmp.eq.s32.totalorder %s16, 1
    %p46 = por %p44, %p45
    %p47 = scmp.ne.s32.totalorder %s36, %s37
    %p48 = scmp.eq.s32.totalorder %s16, 0
    %p49 = por %p47, %p48
    %p50 = scmp.ne.s32.totalorder %s36, %s37
    %p51 = scmp.eq.s32.totalorder %s17, 1
    %p52 = por %p50, %p51
    %p54 = scmp.ne.s32.totalorder %s37, %s53
    %p55 = scmp.eq.s32.totalorder %s17, 0
    %p56 = por %p54, %p55
    %s58 = sadd.s32 %s57, 1
    %p61 = scmp.eq.s32.totalorder %s11, 1
    %p62 = scmp.ne.s32.totalorder %s57, %s59
    %p63 = scmp.eq.s32.totalorder %s11, 0
    %p64 = por %p62, %p63
    %p65 = scmp.ne.s32.totalorder %s57, %s59
    %p66 = scmp.eq.s32.totalorder %s16, 1
    %p67 = por %p65, %p66
    %p68 = scmp.ne.s32.totalorder %s59, %s60
    %p69 = scmp.eq.s32.totalorder %s16, 0
    %p70 = por %p68, %p69
    %p71 = scmp.ne.s32.totalorder %s59, %s60
    %p72 = scmp.eq.s32.totalorder %s17, 1
    %p73 = por %p71, %p72
    %p75 = scmp.ne.s32.totalorder %s60, %s74
    %p76 = scmp.eq.s32.totalorder %s17, 0
    %p77 = por %p75, %p76
    %s79 = sadd.s32 %s78, 1
    %p82 = scmp.eq.s32.totalorder %s11, 1
    %p83 = scmp.ne.s32.totalorder %s78, %s80
    %p84 = scmp.eq.s32.totalorder %s11, 0
    %p85 = por %p83, %p84
    %p86 = scmp.ne.s32.totalorder %s78, %s80
    %p87 = scmp.eq.s32.totalorder %s16, 1
    %p88 = por %p86, %p87
    %p89 = scmp.ne.s32.totalorder %s80, %s81
    %p90 = scmp.eq.s32.totalorder %s16, 0
    %p91 = por %p89, %p90
    %p92 = scmp.ne.s32.totalorder %s80, %s81
    %p93 = scmp.eq.s32.totalorder %s17, 1
    %p94 = por %p92, %p93
    %p96 = scmp.ne.s32.totalorder %s81, %s95
    %p97 = scmp.eq.s32.totalorder %s17, 0
    %p98 = por %p96, %p97
    %s100 = sadd.s32 %s99, 1
    %p103 = scmp.eq.s32.totalorder %s11, 1
    %p104 = scmp.ne.s32.totalorder %s99, %s101
    %p105 = scmp.eq.s32.totalorder %s11, 0
    %p106 = por %p104, %p105
    %p107 = scmp.ne.s32.totalorder %s99, %s101
    %p108 = scmp.eq.s32.totalorder %s16, 1
    %p109 = por %p107, %p108
    %p110 = scmp.ne.s32.totalorder %s101, %s102
    %p111 = scmp.eq.s32.totalorder %s16, 0
    %p112 = por %p110, %p111
    %p113 = scmp.ne.s32.totalorder %s101, %s102
    %p114 = scmp.eq.s32.totalorder %s17, 1
    %p115 = por %p113, %p114
    %p117 = scmp.ne.s32.totalorder %s102, %s116
    %p118 = scmp.eq.s32.totalorder %s17, 0
    %p119 = por %p117, %p118
    %s121 = sadd.s32 %s120, 1
    %p124 = scmp.eq.s32.totalorder %s11, 1
    %p125 = scmp.ne.s32.totalorder %s120, %s122
    %p126 = scmp.eq.s32.totalorder %s11, 0
    %p127 = por %p125, %p126
    %p128 = scmp.ne.s32.totalorder %s120, %s122
    %p129 = scmp.eq.s32.totalorder %s16, 1
    %p130 = por %p128, %p129
    %p131 = scmp.ne.s32.totalorder %s122, %s123
    %p132 = scmp.eq.s32.totalorder %s16, 0
    %p133 = por %p131, %p132
    %p134 = scmp.ne.s32.totalorder %s122, %s123
    %p135 = scmp.eq.s32.totalorder %s17, 1
    %p136 = por %p134, %p135
    %p138 = scmp.ne.s32.totalorder %s123, %s137
    %p139 = scmp.eq.s32.totalorder %s17, 0
    %p140 = por %p138, %p139
    %s141 = ssub.s32 %s18, %s30
    %s142 = ssub.s32 %s19, %s26
    %s143 = sor.u32 %s141, %s142
    %p144 = scmp.eq.s32.totalorder %s143, 0
    %s146 = sadd.s32 %s145, 1
    %s147 = scalar_select %p144, %s145, %s146
    %p150 = pneg %p144
    %p151 = scmp.eq.s32.totalorder %s11, 1
    %p152 = por %p150, %p151
    %p153 = scmp.ne.s32.totalorder %s145, %s148
    %p154 = scmp.eq.s32.totalorder %s11, 0
    %p155 = por %p153, %p154
    %p156 = scmp.ne.s32.totalorder %s145, %s148
    %p157 = scmp.eq.s32.totalorder %s16, 1
    %p158 = por %p156, %p157
    %p159 = scmp.ne.s32.totalorder %s148, %s149
    %p160 = scmp.eq.s32.totalorder %s16, 0
    %p161 = por %p159, %p160
    %p162 = scmp.ne.s32.totalorder %s148, %s149
    %p163 = scmp.eq.s32.totalorder %s17, 1
    %p164 = por %p162, %p163
    %p166 = scmp.ne.s32.totalorder %s149, %s165
    %p167 = scmp.eq.s32.totalorder %s17, 0
    %p168 = por %p166, %p167
    %p169 = scmp.le.s32.totalorder 1, %s11
    %p170 = scmp.lt.s32.totalorder %s11, 3
    %p171 = pnand %p169, %p170
    %p172 = pneg %p171
    // Predicated region
    $region9: #{gcnn_forward.2} parent=5 // pred_check
      _
    $region10: #{gcnn_forward.2} parent=5 // pred_check_branch
      %174 = sbr.rel (%p171) target = $region12
    $region11: #{gcnn_forward.2} parent=5 // pred_region
      %s175 = ssub.s32 %s11, 1
      // Predicated region
      $region13: #{gcnn_forward.2} parent=11 // pred_check
        %p176 = pneg %p70
      $region14: #{gcnn_forward.2} parent=11 // pred_check_branch
        %178 = sbr.rel (%p176) target = $region16
      $region15: #{gcnn_forward.2} parent=11 // pred_region
        _
      $region16: #{gcnn_forward.2} parent=11 // pred_fallthru
        _
      // Predicated region
      $region17: #{gcnn_forward.2} parent=11 // pred_check
        %p179 = pneg %p91
      $region18: #{gcnn_forward.2} parent=11 // pred_check_branch
        %181 = sbr.rel (%p179) target = $region20
      $region19: #{gcnn_forward.2} parent=11 // pred_region
        _
      $region20: #{gcnn_forward.2} parent=11 // pred_fallthru
        _
      // Predicated region
      $region21: #{gcnn_forward.2} parent=11 // pred_check
        %p182 = pneg %p112
      $region22: #{gcnn_forward.2} parent=11 // pred_check_branch
        %184 = sbr.rel (%p182) target = $region24
      $region23: #{gcnn_forward.2} parent=11 // pred_region
        _
      $region24: #{gcnn_forward.2} parent=11 // pred_fallthru
        _
      // Predicated region
      $region25: #{gcnn_forward.2} parent=11 // pred_check
        %p185 = pneg %p133
      $region26: #{gcnn_forward.2} parent=11 // pred_check_branch
        %187 = sbr.rel (%p185) target = $region28
      $region27: #{gcnn_forward.2} parent=11 // pred_region
        _
      $region28: #{gcnn_forward.2} parent=11 // pred_fallthru
        _
    $region12: #{gcnn_forward.2} parent=5 // pred_fallthru
      _
    %p188 = scmp.lt.s32.totalorder %s11, 2
    // Predicated region
    $region29: #{gcnn_forward.2} parent=5 // pred_check
      %p189 = pneg %p188
    $region30: #{gcnn_forward.2} parent=5 // pred_check_branch
      %191 = sbr.rel (%p189) target = $region32
    $region31: #{gcnn_forward.2} parent=5 // pred_region
      // Predicated region
      $region33: #{gcnn_forward.2} parent=31 // pred_check
        %p192 = pneg %p43
      $region34: #{gcnn_forward.2} parent=31 // pred_check_branch
        %194 = sbr.rel (%p192) target = $region36
      $region35: #{gcnn_forward.2} parent=31 // pred_region
        %p195 = scmp.lt.s32.totalorder %s18, 1
        %s196 = scalar_select %p195, %s18, 1
        %s197 = smul.addr %s196, 24
        %s198 = smul.addr %s197, 4
        %s199 = scalar_lea.vmem %s0, %s198
      $region36: #{gcnn_forward.2} parent=31 // pred_fallthru
        _
    $region32: #{gcnn_forward.2} parent=5 // pred_fallthru
      _
    %p200 = scmp.le.s32.totalorder 1, %s11
    %p201 = scmp.lt.s32.totalorder %s11, 3
    %p202 = pnand %p200, %p201
    %p203 = pneg %p202
    // Predicated region
    $region37: #{gcnn_forward.2} parent=5 // pred_check
      _
    $region38: #{gcnn_forward.2} parent=5 // pred_check_branch
      %205 = sbr.rel (%p202) target = $region40
    $region39: #{gcnn_forward.2} parent=5 // pred_region
      %s206 = ssub.s32 %s11, 1
      %p207 = scmp.lt.s32.totalorder %s20, 1
      %s208 = scalar_select %p207, %s20, 1
      %s209 = smul.addr %s208, 24
      %s210 = smul.addr %s209, 4
      %s211 = scalar_lea.vmem %s0, %s210
      %p212 = pneg %p49
      %p213 = pneg %p46
      %p214 = pneg %p70
      %p215 = pneg %p67
      %p216 = pneg %p91
      %p217 = pneg %p88
      %p218 = pneg %p112
      %p219 = pneg %p109
      %p220 = pneg %p133
      %p221 = pneg %p130
      %p222 = pneg %p161
      %p223 = pneg %p158
      %s224 = smul.u32 5, %s21
      %p225 = scmp.lt.s32.totalorder %s20, 1
      %s226 = scalar_select %p225, %s20, 1
      %p227 = scmp.lt.s32.totalorder %s224, 4
      %s228 = scalar_select %p227, %s224, 4
      %s229 = smul.addr %s226, 5
      %s230 = sadd.s32 %s228, %s229
      %s231 = smul.addr %s230, 4
      %s232 = scalar_lea.vmem %s5, %s231
      %p233 = scmp.lt.s32.totalorder %s20, 1
      %s234 = scalar_select %p233, %s20, 1
      %s235 = smul.addr %s234, 24
      %s236 = smul.addr %s235, 4
      %s237 = scalar_lea.vmem %s0, %s236
      %s238 = smul.u32 5, %s21
      %p239 = scmp.lt.s32.totalorder %s20, 1
      %s240 = scalar_select %p239, %s20, 1
      %p241 = scmp.lt.s32.totalorder %s238, 4
      %s242 = scalar_select %p241, %s238, 4
      %s243 = smul.addr %s240, 5
      %s244 = sadd.s32 %s242, %s243
      %s245 = smul.addr %s244, 4
      %s246 = scalar_lea.vmem %s5, %s245
      %s247 = smul.u32 5, %s21
      %s249 = smul.u32 %s21, 40
      %s250 = sshra.s32 %s249, 3
      %s251 = sand.u32 %s249, 7
      %s252 = smul.u32 %s250, 4
      %s253 = smul.addr %s252, 4
      %s254 = scalar_lea.vmem %s237, %s253
      %v255 = vld [vmem:[%s254] sm:$0xff]
      %v256 = vld [vmem:[%s254 + $0x8] sm:$0xff]
      %v257 = vld [vmem:[%s254 + $0x10] sm:$0xff]
      %v258 = vld [vmem:[%s254 + $0x18] sm:$0xff]
      %v259 = vld [vmem:[%s254 + $0x20] sm:$0xff]
      %v260 = vld [vmem:[%s254 + $0x28] sm:$0xff]
      %v261 = vld [vmem:[%s254 + $0x30] sm:$0xff]
      %v262 = vld [vmem:[%s254 + $0x38] sm:$0xff]
      %v263 = vld [vmem:[%s254 + $0x40] sm:$0xff]
      %v264 = vld [vmem:[%s254 + $0x48] sm:$0xff]
      %v265 = vld [vmem:[%s254 + $0x50] sm:$0xff]
      %v266 = vld [vmem:[%s254 + $0x58] sm:$0xff]
      %v267 = vunpack.c.l.bf16 %v255
      %v268 = vunpack.c.h.bf16 %v255
      %v269 = vunpack.c.l.bf16 %v256
      %v270 = vunpack.c.h.bf16 %v256
      %v271 = vunpack.c.l.bf16 %v257
      %v272 = vunpack.c.h.bf16 %v257
      %v273 = vunpack.c.l.bf16 %v258
      %v274 = vunpack.c.h.bf16 %v258
      %v275 = vunpack.c.l.bf16 %v259
      %v276 = vunpack.c.h.bf16 %v259
      %v277 = vunpack.c.l.bf16 %v260
      %v278 = vunpack.c.h.bf16 %v260
      %v279 = vunpack.c.l.bf16 %v261
      %v280 = vunpack.c.h.bf16 %v261
      %v281 = vunpack.c.l.bf16 %v262
      %v282 = vunpack.c.h.bf16 %v262
      %v283 = vunpack.c.l.bf16 %v263
      %v284 = vunpack.c.h.bf16 %v263
      %v285 = vunpack.c.l.bf16 %v264
      %v286 = vunpack.c.h.bf16 %v264
      %v287 = vunpack.c.l.bf16 %v265
      %v288 = vunpack.c.h.bf16 %v265
      %v289 = vunpack.c.l.bf16 %v266
      %v290 = vunpack.c.h.bf16 %v266
      %v291 = vpack.c.bf16 %v271, %v267
      %v292 = vpack.c.bf16 %v272, %v268
      %v293 = vpack.c.bf16 %v273, %v269
      %v294 = vpack.c.bf16 %v274, %v270
      %v295 = vpack.c.bf16 %v279, %v275
      %v296 = vpack.c.bf16 %v280, %v276
      %v297 = vpack.c.bf16 %v281, %v277
      %v298 = vpack.c.bf16 %v282, %v278
      %v299 = vpack.c.bf16 %v283, %v283
      %v300 = vpack.c.bf16 %v284, %v284
      %v301 = vpack.c.bf16 %v285, %v285
      %v302 = vpack.c.bf16 %v286, %v286
      %v303 = vpack.c.bf16 %v287, %v283
      %v304 = vpack.c.bf16 %v288, %v284
      %v305 = vpack.c.bf16 %v289, %v285
      %v306 = vpack.c.bf16 %v290, %v286
      %v307 = vld [vmem:[%s1] sm:$0xf]
      %v308 = vld [vmem:[%s1 + $0x4] sm:$0xf]
      %v309 = vld [vmem:[%s1 + $0x8] sm:$0xf]
      %v310 = vld [vmem:[%s1 + $0xc] sm:$0xf]
      %v311 = vld [vmem:[%s1 + $0x10] sm:$0xf]
      %v312 = vld [vmem:[%s1 + $0x14] sm:$0xf]
      %v313 = vld [vmem:[%s1 + $0x18] sm:$0xf]
      %v314 = vld [vmem:[%s1 + $0x1c] sm:$0xf]
      %v315 = vld [vmem:[%s1 + $0x20] sm:$0xf]
      %v316 = vld [vmem:[%s1 + $0x24] sm:$0xf]
      %v317 = vld [vmem:[%s1 + $0x28] sm:$0xf]
      %v318 = vld [vmem:[%s1 + $0x2c] sm:$0xf]
      %v319 = vld [vmem:[%s1 + $0x30] sm:$0xf]
      %v320 = vld [vmem:[%s1 + $0x34] sm:$0xf]
      %v321 = vld [vmem:[%s1 + $0x38] sm:$0xf]
      %v322 = vld [vmem:[%s1 + $0x3c] sm:$0xf]
      %v323 = vld [vmem:[%s1 + $0x40] sm:$0xf]
      %v324 = vld [vmem:[%s1 + $0x44] sm:$0xf]
      %v325 = vld [vmem:[%s1 + $0x48] sm:$0xf]
      %v326 = vld [vmem:[%s1 + $0x4c] sm:$0xf]
      %v327 = vld [vmem:[%s1 + $0x50] sm:$0xf]
      %v328 = vld [vmem:[%s1 + $0x54] sm:$0xf]
      %v329 = vld [vmem:[%s1 + $0x58] sm:$0xf]
      %v330 = vld [vmem:[%s1 + $0x5c] sm:$0xf]
      %v331 = vld [vmem:[%s1 + $0x60] sm:$0xf]
      %v332 = vld [vmem:[%s1 + $0x64] sm:$0xf]
      %v333 = vld [vmem:[%s1 + $0x68] sm:$0xf]
      %v334 = vld [vmem:[%s1 + $0x6c] sm:$0xf]
      %v335 = vld [vmem:[%s1 + $0x70] sm:$0xf]
      %v336 = vld [vmem:[%s1 + $0x74] sm:$0xf]
      %v337 = vld [vmem:[%s1 + $0x78] sm:$0xf]
      %v338 = vld [vmem:[%s1 + $0x7c] sm:$0xf]
      %v339 = vld [vmem:[%s1 + $0x80] sm:$0xf]
      %v340 = vld [vmem:[%s1 + $0x84] sm:$0xf]
      %v341 = vld [vmem:[%s1 + $0x88] sm:$0xf]
      %v342 = vld [vmem:[%s1 + $0x8c] sm:$0xf]
      %v343 = vld [vmem:[%s1 + $0x90] sm:$0xf]
      %v344 = vld [vmem:[%s1 + $0x94] sm:$0xf]
      %v345 = vld [vmem:[%s1 + $0x98] sm:$0xf]
      %v346 = vld [vmem:[%s1 + $0x9c] sm:$0xf]
      %v347 = vld [vmem:[%s1 + $0xa0] sm:$0xf]
      %v348 = vld [vmem:[%s1 + $0xa4] sm:$0xf]
      %v349 = vld [vmem:[%s1 + $0xa8] sm:$0xf]
      %v350 = vld [vmem:[%s1 + $0xac] sm:$0xf]
      %v351 = vld [vmem:[%s1 + $0xb0] sm:$0xf]
      %v352 = vld [vmem:[%s1 + $0xb4] sm:$0xf]
      %v353 = vld [vmem:[%s1 + $0xb8] sm:$0xf]
      %v354 = vld [vmem:[%s1 + $0xbc] sm:$0xf]
      %v355 = vld [vmem:[%s1 + $0xc0] sm:$0xf]
      %v356 = vld [vmem:[%s1 + $0xc4] sm:$0xf]
      %v357 = vld [vmem:[%s1 + $0xc8] sm:$0xf]
      %v358 = vld [vmem:[%s1 + $0xcc] sm:$0xf]
      %v359 = vld [vmem:[%s1 + $0xd0] sm:$0xf]
      %v360 = vld [vmem:[%s1 + $0xd4] sm:$0xf]
      %v361 = vld [vmem:[%s1 + $0xd8] sm:$0xf]
      %v362 = vld [vmem:[%s1 + $0xdc] sm:$0xf]
      %v363 = vld [vmem:[%s2] sm:$0xf]
      %v364 = vld [vmem:[%s2 + $0x4] sm:$0xf]
      %v365 = vld [vmem:[%s2 + $0x8] sm:$0xf]
      %v366 = vld [vmem:[%s2 + $0xc] sm:$0xf]
      %v367 = vld [vmem:[%s2 + $0x10] sm:$0xf]
      %v368 = vld [vmem:[%s2 + $0x14] sm:$0xf]
      %v369 = vld [vmem:[%s2 + $0x18] sm:$0xf]
      %v370 = vld [vmem:[%s2 + $0x1c] sm:$0xf]
      %v371 = vld [vmem:[%s2 + $0x20] sm:$0xf]
      %v372 = vld [vmem:[%s2 + $0x24] sm:$0xf]
      %v373 = vld [vmem:[%s2 + $0x28] sm:$0xf]
      %v374 = vld [vmem:[%s2 + $0x2c] sm:$0xf]
      %v375 = vld [vmem:[%s2 + $0x30] sm:$0xf]
      %v376 = vld [vmem:[%s2 + $0x34] sm:$0xf]
      %v377 = vld [vmem:[%s2 + $0x38] sm:$0xf]
      %v378 = vld [vmem:[%s2 + $0x3c] sm:$0xf]
      %v379 = vld [vmem:[%s2 + $0x40] sm:$0xf]
      %v380 = vld [vmem:[%s2 + $0x44] sm:$0xf]
      %v381 = vld [vmem:[%s2 + $0x48] sm:$0xf]
      %v382 = vld [vmem:[%s2 + $0x4c] sm:$0xf]
      %v383 = vld [vmem:[%s2 + $0x50] sm:$0xf]
      %v384 = vld [vmem:[%s2 + $0x54] sm:$0xf]
      %v385 = vld [vmem:[%s2 + $0x58] sm:$0xf]
      %v386 = vld [vmem:[%s2 + $0x5c] sm:$0xf]
      %v387 = vld [vmem:[%s2 + $0x60] sm:$0xf]
      %v388 = vld [vmem:[%s2 + $0x64] sm:$0xf]
      %v389 = vld [vmem:[%s2 + $0x68] sm:$0xf]
      %v390 = vld [vmem:[%s2 + $0x6c] sm:$0xf]
      %v391 = vld [vmem:[%s2 + $0x70] sm:$0xf]
      %v392 = vld [vmem:[%s2 + $0x74] sm:$0xf]
      %v393 = vld [vmem:[%s2 + $0x78] sm:$0xf]
      %v394 = vld [vmem:[%s2 + $0x7c] sm:$0xf]
      %v395 = vld [vmem:[%s2 + $0x80] sm:$0xf]
      %v396 = vld [vmem:[%s2 + $0x84] sm:$0xf]
      %v397 = vld [vmem:[%s2 + $0x88] sm:$0xf]
      %v398 = vld [vmem:[%s2 + $0x8c] sm:$0xf]
      %v399 = vld [vmem:[%s2 + $0x90] sm:$0xf]
      %v400 = vld [vmem:[%s2 + $0x94] sm:$0xf]
      %v401 = vld [vmem:[%s2 + $0x98] sm:$0xf]
      %v402 = vld [vmem:[%s2 + $0x9c] sm:$0xf]
      %v403 = vld [vmem:[%s2 + $0xa0] sm:$0xf]
      %v404 = vld [vmem:[%s2 + $0xa4] sm:$0xf]
      %v405 = vld [vmem:[%s2 + $0xa8] sm:$0xf]
      %v406 = vld [vmem:[%s2 + $0xac] sm:$0xf]
      %v407 = vld [vmem:[%s2 + $0xb0] sm:$0xf]
      %v408 = vld [vmem:[%s2 + $0xb4] sm:$0xf]
      %v409 = vld [vmem:[%s2 + $0xb8] sm:$0xf]
      %v410 = vld [vmem:[%s2 + $0xbc] sm:$0xf]
      %v411 = vld [vmem:[%s2 + $0xc0] sm:$0xf]
      %v412 = vld [vmem:[%s2 + $0xc4] sm:$0xf]
      %v413 = vld [vmem:[%s2 + $0xc8] sm:$0xf]
      %v414 = vld [vmem:[%s2 + $0xcc] sm:$0xf]
      %v415 = vld [vmem:[%s2 + $0xd0] sm:$0xf]
      %v416 = vld [vmem:[%s2 + $0xd4] sm:$0xf]
      %v417 = vld [vmem:[%s2 + $0xd8] sm:$0xf]
      %v418 = vld [vmem:[%s2 + $0xdc] sm:$0xf]
      %vm419 = vsmask.f32 7424
      %v421 = vshrl.u32 %v291, 16
      %v423 = vshll.u32 %v291, 16
      %v425 = vrot.slane %v423, 1
      %v426 = vor.u32 %v421, %v425
      %v428 = vshll.u32 %v295, 16
      %v430 = vrot.slane %v428, 1
      %v431 = vsel %vm419, %v426, %v430
      %v433 = vshrl.u32 %v292, 16
      %v435 = vshll.u32 %v292, 16
      %v437 = vrot.slane %v435, 1
      %v438 = vor.u32 %v433, %v437
      %v440 = vshll.u32 %v296, 16
      %v442 = vrot.slane %v440, 1
      %v443 = vsel %vm419, %v438, %v442
      %v445 = vshrl.u32 %v293, 16
      %v447 = vshll.u32 %v293, 16
      %v449 = vrot.slane %v447, 1
      %v450 = vor.u32 %v445, %v449
      %v452 = vshll.u32 %v297, 16
      %v454 = vrot.slane %v452, 1
      %v455 = vsel %vm419, %v450, %v454
      %v457 = vshrl.u32 %v294, 16
      %v459 = vshll.u32 %v294, 16
      %v461 = vrot.slane %v459, 1
      %v462 = vor.u32 %v457, %v461
      %v464 = vshll.u32 %v298, 16
      %v466 = vrot.slane %v464, 1
      %v467 = vsel %vm419, %v462, %v466
      %v468 = vshrl.u32 %v295, 16
      %v470 = vor.u32 %v468, %v430
      %v472 = vshll.u32 %v303, 16
      %v474 = vrot.slane %v472, 1
      %v475 = vsel %vm419, %v470, %v474
      %v476 = vshrl.u32 %v296, 16
      %v478 = vor.u32 %v476, %v442
      %v480 = vshll.u32 %v304, 16
      %v482 = vrot.slane %v480, 1
      %v483 = vsel %vm419, %v478, %v482
      %v484 = vshrl.u32 %v297, 16
      %v486 = vor.u32 %v484, %v454
      %v488 = vshll.u32 %v305, 16
      %v490 = vrot.slane %v488, 1
      %v491 = vsel %vm419, %v486, %v490
      %v492 = vshrl.u32 %v298, 16
      %v494 = vor.u32 %v492, %v466
      %v496 = vshll.u32 %v306, 16
      %v498 = vrot.slane %v496, 1
      %v499 = vsel %vm419, %v494, %v498
      %v500 = vshrl.u32 %v303, 16
      %v502 = vor.u32 %v500, %v474
      %v503 = vshrl.u32 %v304, 16
      %v505 = vor.u32 %v503, %v482
      %v506 = vshrl.u32 %v305, 16
      %v508 = vor.u32 %v506, %v490
      %v509 = vshrl.u32 %v306, 16
      %v511 = vor.u32 %v509, %v498
      %v577 = vunpack.c.l.b16 %v363
      %v578 = vunpack.c.l.b16 %v364
      %v579 = vunpack.c.l.b16 %v365
      %v580 = vunpack.c.l.b16 %v366
      %v581 = vunpack.c.l.b16 %v367
      %v582 = vunpack.c.l.b16 %v368
      %v583 = vunpack.c.l.b16 %v369
      %v584 = vunpack.c.l.b16 %v370
      %v585 = vunpack.c.l.b16 %v371
      %v586 = vunpack.c.l.b16 %v372
      %v587 = vunpack.c.l.b16 %v373
      %v588 = vunpack.c.l.b16 %v374
      %v589 = vunpack.c.l.b16 %v375
      %v590 = vunpack.c.l.b16 %v376
      %v591 = vunpack.c.l.b16 %v377
      %v592 = vunpack.c.l.b16 %v378
      %v593 = vunpack.c.l.b16 %v379
      %v594 = vunpack.c.l.b16 %v380
      %v595 = vunpack.c.l.b16 %v381
      %v596 = vunpack.c.l.b16 %v382
      %v597 = vunpack.c.l.b16 %v383
      %v598 = vunpack.c.l.b16 %v384
      %v599 = vunpack.c.l.b16 %v385
      %v600 = vunpack.c.l.b16 %v386
      %v601 = vunpack.c.l.b16 %v387
      %v602 = vunpack.c.l.b16 %v388
      %v603 = vunpack.c.l.b16 %v389
      %v604 = vunpack.c.l.b16 %v390
      %v605 = vunpack.c.l.b16 %v391
      %v606 = vunpack.c.l.b16 %v392
      %v607 = vunpack.c.l.b16 %v393
      %v608 = vunpack.c.l.b16 %v394
      %v609 = vunpack.c.l.b16 %v395
      %v610 = vunpack.c.l.b16 %v396
      %v611 = vunpack.c.l.b16 %v397
      %v612 = vunpack.c.l.b16 %v398
      %v613 = vunpack.c.l.b16 %v399
      %v614 = vunpack.c.l.b16 %v400
      %v615 = vunpack.c.l.b16 %v401
      %v616 = vunpack.c.l.b16 %v402
      %v617 = vunpack.c.l.b16 %v403
      %v618 = vunpack.c.l.b16 %v404
      %v619 = vunpack.c.l.b16 %v405
      %v620 = vunpack.c.l.b16 %v406
      %v621 = vunpack.c.l.b16 %v407
      %v622 = vunpack.c.l.b16 %v408
      %v623 = vunpack.c.l.b16 %v409
      %v624 = vunpack.c.l.b16 %v410
      %v625 = vunpack.c.l.b16 %v411
      %v626 = vunpack.c.l.b16 %v412
      %v627 = vunpack.c.l.b16 %v413
      %v628 = vunpack.c.l.b16 %v414
      %v629 = vunpack.c.l.b16 %v415
      %v630 = vunpack.c.l.b16 %v416
      %v631 = vunpack.c.l.b16 %v417
      %v632 = vunpack.c.l.b16 %v418
      %v633 = vpack.c.b16 %v578, %v577
      %v634 = vpack.c.b16 %v580, %v579
      %v635 = vpack.c.b16 %v582, %v581
      %v636 = vpack.c.b16 %v584, %v583
      %v637 = vpack.c.b16 %v586, %v585
      %v638 = vpack.c.b16 %v588, %v587
      %v639 = vpack.c.b16 %v590, %v589
      %v640 = vpack.c.b16 %v592, %v591
      %v641 = vpack.c.b16 %v594, %v593
      %v642 = vpack.c.b16 %v596, %v595
      %v643 = vpack.c.b16 %v598, %v597
      %v644 = vpack.c.b16 %v600, %v599
      %v645 = vpack.c.b16 %v602, %v601
      %v646 = vpack.c.b16 %v604, %v603
      %v647 = vpack.c.b16 %v606, %v605
      %v648 = vpack.c.b16 %v608, %v607
      %v649 = vpack.c.b16 %v610, %v609
      %v650 = vpack.c.b16 %v612, %v611
      %v651 = vpack.c.b16 %v614, %v613
      %v652 = vpack.c.b16 %v616, %v615
      %v653 = vpack.c.b16 %v618, %v617
      %v654 = vpack.c.b16 %v620, %v619
      %v655 = vpack.c.b16 %v622, %v621
      %v656 = vpack.c.b16 %v624, %v623
      %v657 = vpack.c.b16 %v626, %v625
      %v658 = vpack.c.b16 %v628, %v627
      %v659 = vpack.c.b16 %v630, %v629
      %v660 = vpack.c.b16 %v632, %v631
      %vm689 = vcmask 523264
      %v691 = vsel %vm689, %v467, 0
      %v694 = vsel %vm689, %v499, 0
      %v697 = vsel %vm689, %v511, 0
      %699 = vmatpush.bf16.msra.mxu0 %v640
      %700 = vmatpush.bf16.msra.mxu0 %v639
      %701 = vmatpush.bf16.msra.mxu0 %v638
      %702 = vmatpush.bf16.msra.mxu0 %v637
      %703 = vmatpush.bf16.msra.mxu0 %v636
      %704 = vmatpush.bf16.msra.mxu0 %v635
      %705 = vmatpush.bf16.msra.mxu0 %v634
      %706 = vmatpush.bf16.msra.mxu0 %v633
      %707 = vmatmul.bf16.gmra.mxu0 %v431
      %v708 = vpop.f32.mrf.mxu0
      %v709 = vadd.f32 0.0, %v708
      %v710 = vpop.f32.mrf.mxu0
      %v711 = vadd.f32 0.0, %v710
      %712 = vmatmul.bf16.gmra.mxu0 %v475
      %v713 = vpop.f32.mrf.mxu0
      %v714 = vadd.f32 0.0, %v713
      %v715 = vpop.f32.mrf.mxu0
      %v716 = vadd.f32 0.0, %v715
      %717 = vmatmul.bf16.gmra.mxu0 %v502
      %v718 = vpop.f32.mrf.mxu0
      %v719 = vadd.f32 0.0, %v718
      %v720 = vpop.f32.mrf.mxu0
      %721 = vdwg.mxu0
      %722 = vmatpush.bf16.msra.mxu0 %v648
      %723 = vmatpush.bf16.msra.mxu0 %v647
      %724 = vmatpush.bf16.msra.mxu0 %v646
      %725 = vmatpush.bf16.msra.mxu0 %v645
      %726 = vmatpush.bf16.msra.mxu0 %v644
      %727 = vmatpush.bf16.msra.mxu0 %v643
      %728 = vmatpush.bf16.msra.mxu0 %v642
      %729 = vmatpush.bf16.msra.mxu0 %v641
      %730 = vmatmul.bf16.gmra.mxu0 %v443
      %v731 = vpop.f32.mrf.mxu0
      %v732 = vadd.f32 %v709, %v731
      %v733 = vpop.f32.mrf.mxu0
      %v734 = vadd.f32 %v711, %v733
      %735 = vmatmul.bf16.gmra.mxu0 %v483
      %v736 = vpop.f32.mrf.mxu0
      %v737 = vadd.f32 %v714, %v736
      %v738 = vpop.f32.mrf.mxu0
      %v739 = vadd.f32 %v716, %v738
      %740 = vmatmul.bf16.gmra.mxu0 %v505
      %v741 = vpop.f32.mrf.mxu0
      %v742 = vadd.f32 %v719, %v741
      %v743 = vpop.f32.mrf.mxu0
      %744 = vdwg.mxu0
      %745 = vmatpush.bf16.msra.mxu0 %v656
      %746 = vmatpush.bf16.msra.mxu0 %v655
      %747 = vmatpush.bf16.msra.mxu0 %v654
      %748 = vmatpush.bf16.msra.mxu0 %v653
      %749 = vmatpush.bf16.msra.mxu0 %v652
      %750 = vmatpush.bf16.msra.mxu0 %v651
      %751 = vmatpush.bf16.msra.mxu0 %v650
      %752 = vmatpush.bf16.msra.mxu0 %v649
      %753 = vmatmul.bf16.gmra.mxu0 %v455
      %v754 = vpop.f32.mrf.mxu0
      %v755 = vadd.f32 %v732, %v754
      %v756 = vpop.f32.mrf.mxu0
      %v757 = vadd.f32 %v734, %v756
      %758 = vmatmul.bf16.gmra.mxu0 %v491
      %v759 = vpop.f32.mrf.mxu0
      %v760 = vadd.f32 %v737, %v759
      %v761 = vpop.f32.mrf.mxu0
      %v762 = vadd.f32 %v739, %v761
      %763 = vmatmul.bf16.gmra.mxu0 %v508
      %v764 = vpop.f32.mrf.mxu0
      %v765 = vadd.f32 %v742, %v764
      %v766 = vpop.f32.mrf.mxu0
      %767 = vdwg.mxu0
      %768 = vmatpush.bf16.msra.mxu0 0
      %769 = vmatpush.bf16.msra.mxu0 0
      %770 = vmatpush.bf16.msra.mxu0 0
      %771 = vmatpush.bf16.msra.mxu0 0
      %772 = vmatpush.bf16.msra.mxu0 %v660
      %773 = vmatpush.bf16.msra.mxu0 %v659
      %774 = vmatpush.bf16.msra.mxu0 %v658
      %775 = vmatpush.bf16.msra.mxu0 %v657
      %776 = vmatmul.bf16.gmra.mxu0 %v691
      %v777 = vpop.f32.mrf.mxu0
      %v778 = vadd.f32 %v755, %v777
      %v779 = vpop.f32.mrf.mxu0
      %v780 = vadd.f32 %v757, %v779
      %781 = vmatmul.bf16.gmra.mxu0 %v694
      %v782 = vpop.f32.mrf.mxu0
      %v783 = vadd.f32 %v760, %v782
      %v784 = vpop.f32.mrf.mxu0
      %v785 = vadd.f32 %v762, %v784
      %786 = vmatmul.bf16.gmra.mxu0 %v697
      %v787 = vpop.f32.mrf.mxu0
      %v788 = vadd.f32 %v765, %v787
      %v789 = vpop.f32.mrf.mxu0
      %790 = vdwg.mxu0
      %v847 = vunpack.c.l.b16 %v307
      %v848 = vunpack.c.l.b16 %v308
      %v849 = vunpack.c.l.b16 %v309
      %v850 = vunpack.c.l.b16 %v310
      %v851 = vunpack.c.l.b16 %v311
      %v852 = vunpack.c.l.b16 %v312
      %v853 = vunpack.c.l.b16 %v313
      %v854 = vunpack.c.l.b16 %v314
      %v855 = vunpack.c.l.b16 %v315
      %v856 = vunpack.c.l.b16 %v316
      %v857 = vunpack.c.l.b16 %v317
      %v858 = vunpack.c.l.b16 %v318
      %v859 = vunpack.c.l.b16 %v319
      %v860 = vunpack.c.l.b16 %v320
      %v861 = vunpack.c.l.b16 %v321
      %v862 = vunpack.c.l.b16 %v322
      %v863 = vunpack.c.l.b16 %v323
      %v864 = vunpack.c.l.b16 %v324
      %v865 = vunpack.c.l.b16 %v325
      %v866 = vunpack.c.l.b16 %v326
      %v867 = vunpack.c.l.b16 %v327
      %v868 = vunpack.c.l.b16 %v328
      %v869 = vunpack.c.l.b16 %v329
      %v870 = vunpack.c.l.b16 %v330
      %v871 = vunpack.c.l.b16 %v331
      %v872 = vunpack.c.l.b16 %v332
      %v873 = vunpack.c.l.b16 %v333
      %v874 = vunpack.c.l.b16 %v334
      %v875 = vunpack.c.l.b16 %v335
      %v876 = vunpack.c.l.b16 %v336
      %v877 = vunpack.c.l.b16 %v337
      %v878 = vunpack.c.l.b16 %v338
      %v879 = vunpack.c.l.b16 %v339
      %v880 = vunpack.c.l.b16 %v340
      %v881 = vunpack.c.l.b16 %v341
      %v882 = vunpack.c.l.b16 %v342
      %v883 = vunpack.c.l.b16 %v343
      %v884 = vunpack.c.l.b16 %v344
      %v885 = vunpack.c.l.b16 %v345
      %v886 = vunpack.c.l.b16 %v346
      %v887 = vunpack.c.l.b16 %v347
      %v888 = vunpack.c.l.b16 %v348
      %v889 = vunpack.c.l.b16 %v349
      %v890 = vunpack.c.l.b16 %v350
      %v891 = vunpack.c.l.b16 %v351
      %v892 = vunpack.c.l.b16 %v352
      %v893 = vunpack.c.l.b16 %v353
      %v894 = vunpack.c.l.b16 %v354
      %v895 = vunpack.c.l.b16 %v355
      %v896 = vunpack.c.l.b16 %v356
      %v897 = vunpack.c.l.b16 %v357
      %v898 = vunpack.c.l.b16 %v358
      %v899 = vunpack.c.l.b16 %v359
      %v900 = vunpack.c.l.b16 %v360
      %v901 = vunpack.c.l.b16 %v361
      %v902 = vunpack.c.l.b16 %v362
      %v903 = vpack.c.b16 %v848, %v847
      %v904 = vpack.c.b16 %v850, %v849
      %v905 = vpack.c.b16 %v852, %v851
      %v906 = vpack.c.b16 %v854, %v853
      %v907 = vpack.c.b16 %v856, %v855
      %v908 = vpack.c.b16 %v858, %v857
      %v909 = vpack.c.b16 %v860, %v859
      %v910 = vpack.c.b16 %v862, %v861
      %v911 = vpack.c.b16 %v864, %v863
      %v912 = vpack.c.b16 %v866, %v865
      %v913 = vpack.c.b16 %v868, %v867
      %v914 = vpack.c.b16 %v870, %v869
      %v915 = vpack.c.b16 %v872, %v871
      %v916 = vpack.c.b16 %v874, %v873
      %v917 = vpack.c.b16 %v876, %v875
      %v918 = vpack.c.b16 %v878, %v877
      %v919 = vpack.c.b16 %v880, %v879
      %v920 = vpack.c.b16 %v882, %v881
      %v921 = vpack.c.b16 %v884, %v883
      %v922 = vpack.c.b16 %v886, %v885
      %v923 = vpack.c.b16 %v888, %v887
      %v924 = vpack.c.b16 %v890, %v889
      %v925 = vpack.c.b16 %v892, %v891
      %v926 = vpack.c.b16 %v894, %v893
      %v927 = vpack.c.b16 %v896, %v895
      %v928 = vpack.c.b16 %v898, %v897
      %v929 = vpack.c.b16 %v900, %v899
      %v930 = vpack.c.b16 %v902, %v901
      %v959 = vsel %vm689, %v294, 0
      %v961 = vsel %vm689, %v298, 0
      %v964 = vsel %vm689, %v302, 0
      %966 = vmatpush.bf16.msra.mxu0 %v910
      %967 = vmatpush.bf16.msra.mxu0 %v909
      %968 = vmatpush.bf16.msra.mxu0 %v908
      %969 = vmatpush.bf16.msra.mxu0 %v907
      %970 = vmatpush.bf16.msra.mxu0 %v906
      %971 = vmatpush.bf16.msra.mxu0 %v905
      %972 = vmatpush.bf16.msra.mxu0 %v904
      %973 = vmatpush.bf16.msra.mxu0 %v903
      %974 = vmatmul.bf16.gmra.mxu0 %v291
      %v975 = vpop.f32.mrf.mxu0
      %v976 = vadd.f32 %v778, %v975
      %v977 = vpop.f32.mrf.mxu0
      %v978 = vadd.f32 %v780, %v977
      %979 = vmatmul.bf16.gmra.mxu0 %v295
      %v980 = vpop.f32.mrf.mxu0
      %v981 = vadd.f32 %v783, %v980
      %v982 = vpop.f32.mrf.mxu0
      %v983 = vadd.f32 %v785, %v982
      %984 = vmatmul.bf16.gmra.mxu0 %v299
      %v985 = vpop.f32.mrf.mxu0
      %v986 = vadd.f32 %v788, %v985
      %v987 = vpop.f32.mrf.mxu0
      %988 = vdwg.mxu0
      %989 = vmatpush.bf16.msra.mxu0 %v918
      %990 = vmatpush.bf16.msra.mxu0 %v917
      %991 = vmatpush.bf16.msra.mxu0 %v916
      %992 = vmatpush.bf16.msra.mxu0 %v915
      %993 = vmatpush.bf16.msra.mxu0 %v914
      %994 = vmatpush.bf16.msra.mxu0 %v913
      %995 = vmatpush.bf16.msra.mxu0 %v912
      %996 = vmatpush.bf16.msra.mxu0 %v911
      %997 = vmatmul.bf16.gmra.mxu0 %v292
      %v998 = vpop.f32.mrf.mxu0
      %v999 = vadd.f32 %v976, %v998
      %v1000 = vpop.f32.mrf.mxu0
      %v1001 = vadd.f32 %v978, %v1000
      %1002 = vmatmul.bf16.gmra.mxu0 %v296
      %v1003 = vpop.f32.mrf.mxu0
      %v1004 = vadd.f32 %v981, %v1003
      %v1005 = vpop.f32.mrf.mxu0
      %v1006 = vadd.f32 %v983, %v1005
      %1007 = vmatmul.bf16.gmra.mxu0 %v300
      %v1008 = vpop.f32.mrf.mxu0
      %v1009 = vadd.f32 %v986, %v1008
      %v1010 = vpop.f32.mrf.mxu0
      %1011 = vdwg.mxu0
      %1012 = vmatpush.bf16.msra.mxu0 %v926
      %1013 = vmatpush.bf16.msra.mxu0 %v925
      %1014 = vmatpush.bf16.msra.mxu0 %v924
      %1015 = vmatpush.bf16.msra.mxu0 %v923
      %1016 = vmatpush.bf16.msra.mxu0 %v922
      %1017 = vmatpush.bf16.msra.mxu0 %v921
      %1018 = vmatpush.bf16.msra.mxu0 %v920
      %1019 = vmatpush.bf16.msra.mxu0 %v919
      %1020 = vmatmul.bf16.gmra.mxu0 %v293
      %v1021 = vpop.f32.mrf.mxu0
      %v1022 = vadd.f32 %v999, %v1021
      %v1023 = vpop.f32.mrf.mxu0
      %v1024 = vadd.f32 %v1001, %v1023
      %1025 = vmatmul.bf16.gmra.mxu0 %v297
      %v1026 = vpop.f32.mrf.mxu0
      %v1027 = vadd.f32 %v1004, %v1026
      %v1028 = vpop.f32.mrf.mxu0
      %v1029 = vadd.f32 %v1006, %v1028
      %1030 = vmatmul.bf16.gmra.mxu0 %v301
      %v1031 = vpop.f32.mrf.mxu0
      %v1032 = vadd.f32 %v1009, %v1031
      %v1033 = vpop.f32.mrf.mxu0
      %1034 = vdwg.mxu0
      %1035 = vmatpush.bf16.msra.mxu0 0
      %1036 = vmatpush.bf16.msra.mxu0 0
      %1037 = vmatpush.bf16.msra.mxu0 0
      %1038 = vmatpush.bf16.msra.mxu0 0
      %1039 = vmatpush.bf16.msra.mxu0 %v930
      %1040 = vmatpush.bf16.msra.mxu0 %v929
      %1041 = vmatpush.bf16.msra.mxu0 %v928
      %1042 = vmatpush.bf16.msra.mxu0 %v927
      %1043 = vmatmul.bf16.gmra.mxu0 %v959
      %v1044 = vpop.f32.mrf.mxu0
      %v1045 = vadd.f32 %v1022, %v1044
      %v1046 = vpop.f32.mrf.mxu0
      %v1047 = vadd.f32 %v1024, %v1046
      %1048 = vmatmul.bf16.gmra.mxu0 %v961
      %v1049 = vpop.f32.mrf.mxu0
      %v1050 = vadd.f32 %v1027, %v1049
      %v1051 = vpop.f32.mrf.mxu0
      %v1052 = vadd.f32 %v1029, %v1051
      %1053 = vmatmul.bf16.gmra.mxu0 %v964
      %v1054 = vpop.f32.mrf.mxu0
      %v1055 = vadd.f32 %v1032, %v1054
      %v1056 = vpop.f32.mrf.mxu0
      %1057 = vdwg.mxu0
      %v1058 = vld [vmem:[%s3] sm:$0xf]
      %v1059 = vld [vmem:[%s3 + $0x4] sm:$0xf]
      %v1060 = vld [vmem:[%s3 + $0x8] sm:$0xf]
      %v1061 = vld [vmem:[%s3 + $0xc] sm:$0xf]
      %v1062 = vld [vmem:[%s3 + $0x10] sm:$0xf]
      %v1063 = vld [vmem:[%s3 + $0x14] sm:$0xf]
      %v1064 = vld [vmem:[%s3 + $0x18] sm:$0xf]
      %v1065 = vld [vmem:[%s3 + $0x1c] sm:$0xf]
      %vm1069 = vcmask 1046528
      %v1070 = vrot.slane %v291, 1
      %v1071 = vrot.slane %v295, 1
      %v1072 = vsel %vm1069, %v1070, %v1071
      %v1073 = vrot.slane %v303, 1
      %v1074 = vsel %vm1069, %v1071, %v1073
      %v1083 = vunpack.c.l.b16 %v1058
      %v1084 = vunpack.c.l.b16 %v1059
      %v1085 = vunpack.c.l.b16 %v1060
      %v1086 = vunpack.c.l.b16 %v1061
      %v1087 = vunpack.c.l.b16 %v1062
      %v1088 = vunpack.c.l.b16 %v1063
      %v1089 = vunpack.c.l.b16 %v1064
      %v1090 = vunpack.c.l.b16 %v1065
      %v1091 = vpack.c.b16 %v1084, %v1083
      %v1092 = vpack.c.b16 %v1086, %v1085
      %v1093 = vpack.c.b16 %v1088, %v1087
      %v1094 = vpack.c.b16 %v1090, %v1089
      %v1100 = vsel %vm689, %v1072, 0
      %v1103 = vsel %vm689, %v1074, 0
      %v1106 = vsel %vm689, %v1073, 0
      %1108 = vmatpush.bf16.msra.mxu0 0
      %1109 = vmatpush.bf16.msra.mxu0 0
      %1110 = vmatpush.bf16.msra.mxu0 0
      %1111 = vmatpush.bf16.msra.mxu0 0
      %1112 = vmatpush.bf16.msra.mxu0 %v1094
      %1113 = vmatpush.bf16.msra.mxu0 %v1093
      %1114 = vmatpush.bf16.msra.mxu0 %v1092
      %1115 = vmatpush.bf16.msra.mxu0 %v1091
      %1116 = vmatmul.bf16.gmra.mxu0 %v1100
      %v1117 = vpop.f32.mrf.mxu0
      %v1118 = vadd.f32 0.0, %v1117
      %v1119 = vpop.f32.mrf.mxu0
      %v1120 = vadd.f32 0.0, %v1119
      %1121 = vmatmul.bf16.gmra.mxu0 %v1103
      %v1122 = vpop.f32.mrf.mxu0
      %v1123 = vadd.f32 0.0, %v1122
      %v1124 = vpop.f32.mrf.mxu0
      %v1125 = vadd.f32 0.0, %v1124
      %1126 = vmatmul.bf16.gmra.mxu0 %v1106
      %v1127 = vpop.f32.mrf.mxu0
      %v1128 = vadd.f32 0.0, %v1127
      %v1129 = vpop.f32.mrf.mxu0
      %1130 = vdwg.mxu0
      %v1131 = vadd.f32 %v1045, %v1118
      %v1132 = vadd.f32 %v1047, %v1120
      %v1133 = vadd.f32 %v1050, %v1123
      %v1134 = vadd.f32 %v1052, %v1125
      %v1135 = vadd.f32 %v1055, %v1128
      %v1136 = vld [vmem:[%s4] sm:$0x1]
      %v1138 = vperm.slane %v1136, 0
      %v1140 = vadd.f32 %v1131, %v1138
      %v1141 = vadd.f32 %v1132, %v1138
      %v1142 = vadd.f32 %v1133, %v1138
      %v1143 = vadd.f32 %v1134, %v1138
      %v1144 = vadd.f32 %v1135, %v1138
      %v1145 = vxor.u32 %v1140, 2147483648
      %v1146 = vxor.u32 %v1141, 2147483648
      %v1147 = vxor.u32 %v1142, 2147483648
      %v1148 = vxor.u32 %v1143, 2147483648
      %v1149 = vxor.u32 %v1144, 2147483648
      %v1150 = vmul.f32 %v1145, 1.442695
      %v1151 = vpow.pop %v1150
      %v1152 = vmul.f32 %v1146, 1.442695
      %v1153 = vpow.pop %v1152
      %v1154 = vmul.f32 %v1147, 1.442695
      %v1155 = vpow.pop %v1154
      %v1156 = vmul.f32 %v1148, 1.442695
      %v1157 = vpow.pop %v1156
      %v1158 = vmul.f32 %v1149, 1.442695
      %v1159 = vpow.pop %v1158
      %v1160 = vadd.f32 %v1151, 1.0
      %v1161 = vadd.f32 %v1153, 1.0
      %v1162 = vadd.f32 %v1155, 1.0
      %v1163 = vadd.f32 %v1157, 1.0
      %v1164 = vadd.f32 %v1159, 1.0
      %v1165 = vrcp.pop %v1160
      %v1166 = vmul.f32 %v1160, %v1165
      %v1167 = vsub.f32 1.0, %v1166
      %v1168 = vmul.f32 %v1165, %v1167
      %v1169 = vadd.f32 %v1165, %v1168
      %vm1170 = vweird.f32 %v1160
      %vm1171 = vweird.f32 %v1165
      %vm1172 = vmor %vm1170, %vm1171
      %v1173 = vsel %vm1172, %v1165, %v1169
      %v1174 = vand.u32 2147483647, %v1160
      %vm1175 = vcmp.eq.f32.partialorder %v1174, 8.507059e+37
      %v1176 = vand.u32 %v1160, 2147483648
      %v1177 = vor.u32 1.1754944e-38, %v1176
      %v1178 = vsel %vm1175, %v1177, %v1173
      %v1179 = vmul.f32 1.0, %v1178
      %v1180 = vrcp.pop %v1161
      %v1181 = vmul.f32 %v1161, %v1180
      %v1182 = vsub.f32 1.0, %v1181
      %v1183 = vmul.f32 %v1180, %v1182
      %v1184 = vadd.f32 %v1180, %v1183
      %vm1185 = vweird.f32 %v1161
      %vm1186 = vweird.f32 %v1180
      %vm1187 = vmor %vm1185, %vm1186
      %v1188 = vsel %vm1187, %v1180, %v1184
      %v1189 = vand.u32 2147483647, %v1161
      %vm1190 = vcmp.eq.f32.partialorder %v1189, 8.507059e+37
      %v1191 = vand.u32 %v1161, 2147483648
      %v1192 = vor.u32 1.1754944e-38, %v1191
      %v1193 = vsel %vm1190, %v1192, %v1188
      %v1194 = vmul.f32 1.0, %v1193
      %v1195 = vrcp.pop %v1162
      %v1196 = vmul.f32 %v1162, %v1195
      %v1197 = vsub.f32 1.0, %v1196
      %v1198 = vmul.f32 %v1195, %v1197
      %v1199 = vadd.f32 %v1195, %v1198
      %vm1200 = vweird.f32 %v1162
      %vm1201 = vweird.f32 %v1195
      %vm1202 = vmor %vm1200, %vm1201
      %v1203 = vsel %vm1202, %v1195, %v1199
      %v1204 = vand.u32 2147483647, %v1162
      %vm1205 = vcmp.eq.f32.partialorder %v1204, 8.507059e+37
      %v1206 = vand.u32 %v1162, 2147483648
      %v1207 = vor.u32 1.1754944e-38, %v1206
      %v1208 = vsel %vm1205, %v1207, %v1203
      %v1209 = vmul.f32 1.0, %v1208
      %v1210 = vrcp.pop %v1163
      %v1211 = vmul.f32 %v1163, %v1210
      %v1212 = vsub.f32 1.0, %v1211
      %v1213 = vmul.f32 %v1210, %v1212
      %v1214 = vadd.f32 %v1210, %v1213
      %vm1215 = vweird.f32 %v1163
      %vm1216 = vweird.f32 %v1210
      %vm1217 = vmor %vm1215, %vm1216
      %v1218 = vsel %vm1217, %v1210, %v1214
      %v1219 = vand.u32 2147483647, %v1163
      %vm1220 = vcmp.eq.f32.partialorder %v1219, 8.507059e+37
      %v1221 = vand.u32 %v1163, 2147483648
      %v1222 = vor.u32 1.1754944e-38, %v1221
      %v1223 = vsel %vm1220, %v1222, %v1218
      %v1224 = vmul.f32 1.0, %v1223
      %v1225 = vrcp.pop %v1164
      %v1226 = vmul.f32 %v1164, %v1225
      %v1227 = vsub.f32 1.0, %v1226
      %v1228 = vmul.f32 %v1225, %v1227
      %v1229 = vadd.f32 %v1225, %v1228
      %vm1230 = vweird.f32 %v1164
      %vm1231 = vweird.f32 %v1225
      %vm1232 = vmor %vm1230, %vm1231
      %v1233 = vsel %vm1232, %v1225, %v1229
      %v1234 = vand.u32 2147483647, %v1164
      %vm1235 = vcmp.eq.f32.partialorder %v1234, 8.507059e+37
      %v1236 = vand.u32 %v1164, 2147483648
      %v1237 = vor.u32 1.1754944e-38, %v1236
      %v1238 = vsel %vm1235, %v1237, %v1233
      %v1239 = vmul.f32 1.0, %v1238
      %1245 = vrot.lane.b32.xlu0 %v1179, 64
      %v1246 = vpop.permute.xlu0 %1245
      %1247 = vrot.lane.b32.xlu0 %v1194, 64
      %v1248 = vpop.permute.xlu0 %1247
      %1249 = vrot.lane.b32.xlu0 %v1209, 64
      %v1250 = vpop.permute.xlu0 %1249
      %1251 = vrot.lane.b32.xlu0 %v1224, 64
      %v1252 = vpop.permute.xlu0 %1251
      %1253 = vrot.lane.b32.xlu0 %v1239, 64
      %v1254 = vpop.permute.xlu0 %1253
      %v1260 = vmul.f32 %v1140, %v1246
      %v1261 = vmul.f32 %v1141, %v1248
      %v1262 = vmul.f32 %v1142, %v1250
      %v1263 = vmul.f32 %v1143, %v1252
      %v1264 = vmul.f32 %v1144, %v1254
      %v1265 = vpack.c.bf16 %v1260, %v1260
      %v1266 = vpack.c.bf16 %v1261, %v1261
      %v1267 = vpack.c.bf16 %v1262, %v1262
      %v1268 = vpack.c.bf16 %v1263, %v1263
      %v1269 = vpack.c.bf16 %v1264, %v1264
      %vm1270 = vcmask 519168
      %1271 = vst.msk [vmem:[%s246] sm:$0xf] %vm1270, %v1265
      %1272 = vst.msk [vmem:[%s246 + $0x4] sm:$0xf] %vm1270, %v1266
      %1273 = vst.msk [vmem:[%s246 + $0x8] sm:$0xf] %vm1270, %v1267
      %1274 = vst.msk [vmem:[%s246 + $0xc] sm:$0xf] %vm1270, %v1268
      %1275 = vst.msk [vmem:[%s246 + $0x10] sm:$0xf] %vm1270, %v1269
      %s1276 = smul.u32 5, %s21
      %p1277 = scmp.lt.s32.totalorder %s20, 1
      %s1278 = scalar_select %p1277, %s20, 1
      %p1279 = scmp.lt.s32.totalorder %s1276, 4
      %s1280 = scalar_select %p1279, %s1276, 4
      %s1281 = smul.addr %s1278, 5
      %s1282 = sadd.s32 %s1280, %s1281
      %s1283 = smul.addr %s1282, 4
      %s1284 = scalar_lea.vmem %s5, %s1283
      // Predicated region
      $region41: #{gcnn_forward.2} parent=39 // pred_check
        %p1285 = pneg %p158
      $region42: #{gcnn_forward.2} parent=39 // pred_check_branch
        %1287 = sbr.rel (%p1285) target = $region44
      $region43: #{gcnn_forward.2} parent=39 // pred_region
        %s1288 = smul.u32 5, %s21
      $region44: #{gcnn_forward.2} parent=39 // pred_fallthru
        _
    $region40: #{gcnn_forward.2} parent=5 // pred_fallthru
      _
    %p1289 = scmp.le.s32.totalorder 2, %s11
    // Predicated region
    $region45: #{gcnn_forward.2} parent=5 // pred_check
      %p1290 = pneg %p1289
    $region46: #{gcnn_forward.2} parent=5 // pred_check_branch
      %1292 = sbr.rel (%p1290) target = $region48
    $region47: #{gcnn_forward.2} parent=5 // pred_region
      %s1293 = ssub.s32 %s11, 2
      // Predicated region
      $region49: #{gcnn_forward.2} parent=47 // pred_check
        %p1294 = pneg %p164
      $region50: #{gcnn_forward.2} parent=47 // pred_check_branch
        %1296 = sbr.rel (%p1294) target = $region52
      $region51: #{gcnn_forward.2} parent=47 // pred_region
        %s1297 = smul.u32 5, %s23
        %p1298 = scmp.lt.s32.totalorder %s22, 1
        %s1299 = scalar_select %p1298, %s22, 1
        %p1300 = scmp.lt.s32.totalorder %s1297, 4
        %s1301 = scalar_select %p1300, %s1297, 4
        %s1302 = smul.addr %s1299, 5
        %s1303 = sadd.s32 %s1301, %s1302
        %s1304 = smul.addr %s1303, 4
        %s1305 = scalar_lea.vmem %s5, %s1304
      $region52: #{gcnn_forward.2} parent=47 // pred_fallthru
        _
    $region48: #{gcnn_forward.2} parent=5 // pred_fallthru
      _
  $region6: #{gcnn_forward.2} parent=0 // loop_footer
    %s15 = sadd.s32 1, %s11
  $region7: #{gcnn_forward.2} parent=0 // loop_footer_branch
    %10 = sbr.rel target = $region3
  $region8: #{gcnn_forward.2} parent=0 // loop_exit
    _

// kernel: gcnn_forward.3
$region0: #{gcnn_forward.3}
  #allocation0 [shape = 'u32[]', space=smem, size = 0x4, offset = 0x4, fixed_abs, tag = 'smem constant byte address 0x4 - core index']
  #allocation1 [shape = 'u32[72,128]{1,0:T(1,128)}', space=vmem, size = 0x9000, scoped, tag = 'internal scratch']
  %s0 = inlined_call_operand.vmem [shape: bf16[2,16,448], index: 0, kind: input, shape index: {}]
  %s1 = inlined_call_operand.vmem [shape: bf16[448,128], index: 1, kind: input, shape index: {}]
  %s2 = inlined_call_operand.vmem [shape: bf16[448,128], index: 2, kind: input, shape index: {}]
  %s3 = inlined_call_operand.vmem [shape: bf16[64,128], index: 3, kind: input, shape index: {}]
  %s4 = inlined_call_operand.vmem [shape: f32[1,128], index: 4, kind: input, shape index: {}]
  %s5 = inlined_call_operand.vmem [shape: bf16[2,8,64], index: 5, kind: output, shape index: {}]
  %s6 = sld [smem:[#allocation0]]
  $region53: #{gcnn_forward.3} parent=0
    _
  %s8 = ssub.s32 1, %s6
  %s9 = scalar_select 0, %s8, %s6
  loop: start=0, step=1, limit=4
  $region2: #{gcnn_forward.3} parent=0 // loop_pre_header
    _
  $region3: #{gcnn_forward.3} parent=0 // loop_header
    %s11 = sphi 0, %s15
    %p12 = scmp.ge.s32.totalorder %s11, 4
    %s18 = sphi 0, %s30
    %s19 = sphi 0, %s26
    %s20 = sphi 0, %s18
    %s21 = sphi 0, %s19
    %s22 = sphi 0, %s20
    %s23 = sphi 0, %s21
    %s33 = sphi 0, %s35
    %s36 = sphi 0, %s33
    %s37 = sphi 0, %s36
    %s53 = sphi 0, %s37
    %s57 = sphi 0, %s57
    %s59 = sphi 0, %s57
    %s60 = sphi 0, %s59
    %s74 = sphi 0, %s60
    %s78 = sphi 0, %s78
    %s80 = sphi 0, %s78
    %s81 = sphi 0, %s80
    %s95 = sphi 0, %s81
    %s99 = sphi 0, %s99
    %s101 = sphi 0, %s99
    %s102 = sphi 0, %s101
    %s116 = sphi 0, %s102
    %s120 = sphi 0, %s120
    %s122 = sphi 0, %s120
    %s123 = sphi 0, %s122
    %s137 = sphi 0, %s123
    %s145 = sphi 0, %s147
    %s148 = sphi 0, %s145
    %s149 = sphi 0, %s148
    %s165 = sphi 0, %s149
  $region4: #{gcnn_forward.3} parent=0 // loop_header_branch
    %14 = sbr.rel (%p12) target = $region8
  $region5: #{gcnn_forward.3} parent=0 // loop_body
    %s16 = ssub.s32 %s11, 1
    %s17 = ssub.s32 %s11, 2
    %s24 = sadd.s32 1, %s19
    %p25 = scmp.ge.s32.totalorder %s24, 1
    %s26 = scalar_select %p25, 0, %s24
    %s27 = sadd.s32 1, %s18
    %s28 = scalar_select %p25, %s27, %s18
    %p29 = scmp.ge.s32.totalorder %s28, 2
    %s30 = scalar_select %p29, 0, %s28
    %s31 = ssub.s32 %s18, %s30
    %p32 = scmp.eq.s32.totalorder %s31, 0
    %s34 = sadd.s32 %s33, 1
    %s35 = scalar_select %p32, %s33, %s34
    %p38 = pneg %p32
    %p39 = scmp.eq.s32.totalorder %s11, 1
    %p40 = por %p38, %p39
    %p41 = scmp.ne.s32.totalorder %s33, %s36
    %p42 = scmp.eq.s32.totalorder %s11, 0
    %p43 = por %p41, %p42
    %p44 = scmp.ne.s32.totalorder %s33, %s36
    %p45 = scmp.eq.s32.totalorder %s16, 1
    %p46 = por %p44, %p45
    %p47 = scmp.ne.s32.totalorder %s36, %s37
    %p48 = scmp.eq.s32.totalorder %s16, 0
    %p49 = por %p47, %p48
    %p50 = scmp.ne.s32.totalorder %s36, %s37
    %p51 = scmp.eq.s32.totalorder %s17, 1
    %p52 = por %p50, %p51
    %p54 = scmp.ne.s32.totalorder %s37, %s53
    %p55 = scmp.eq.s32.totalorder %s17, 0
    %p56 = por %p54, %p55
    %s58 = sadd.s32 %s57, 1
    %p61 = scmp.eq.s32.totalorder %s11, 1
    %p62 = scmp.ne.s32.totalorder %s57, %s59
    %p63 = scmp.eq.s32.totalorder %s11, 0
    %p64 = por %p62, %p63
    %p65 = scmp.ne.s32.totalorder %s57, %s59
    %p66 = scmp.eq.s32.totalorder %s16, 1
    %p67 = por %p65, %p66
    %p68 = scmp.ne.s32.totalorder %s59, %s60
    %p69 = scmp.eq.s32.totalorder %s16, 0
    %p70 = por %p68, %p69
    %p71 = scmp.ne.s32.totalorder %s59, %s60
    %p72 = scmp.eq.s32.totalorder %s17, 1
    %p73 = por %p71, %p72
    %p75 = scmp.ne.s32.totalorder %s60, %s74
    %p76 = scmp.eq.s32.totalorder %s17, 0
    %p77 = por %p75, %p76
    %s79 = sadd.s32 %s78, 1
    %p82 = scmp.eq.s32.totalorder %s11, 1
    %p83 = scmp.ne.s32.totalorder %s78, %s80
    %p84 = scmp.eq.s32.totalorder %s11, 0
    %p85 = por %p83, %p84
    %p86 = scmp.ne.s32.totalorder %s78, %s80
    %p87 = scmp.eq.s32.totalorder %s16, 1
    %p88 = por %p86, %p87
    %p89 = scmp.ne.s32.totalorder %s80, %s81
    %p90 = scmp.eq.s32.totalorder %s16, 0
    %p91 = por %p89, %p90
    %p92 = scmp.ne.s32.totalorder %s80, %s81
    %p93 = scmp.eq.s32.totalorder %s17, 1
    %p94 = por %p92, %p93
    %p96 = scmp.ne.s32.totalorder %s81, %s95
    %p97 = scmp.eq.s32.totalorder %s17, 0
    %p98 = por %p96, %p97
    %s100 = sadd.s32 %s99, 1
    %p103 = scmp.eq.s32.totalorder %s11, 1
    %p104 = scmp.ne.s32.totalorder %s99, %s101
    %p105 = scmp.eq.s32.totalorder %s11, 0
    %p106 = por %p104, %p105
    %p107 = scmp.ne.s32.totalorder %s99, %s101
    %p108 = scmp.eq.s32.totalorder %s16, 1
    %p109 = por %p107, %p108
    %p110 = scmp.ne.s32.totalorder %s101, %s102
    %p111 = scmp.eq.s32.totalorder %s16, 0
    %p112 = por %p110, %p111
    %p113 = scmp.ne.s32.totalorder %s101, %s102
    %p114 = scmp.eq.s32.totalorder %s17, 1
    %p115 = por %p113, %p114
    %p117 = scmp.ne.s32.totalorder %s102, %s116
    %p118 = scmp.eq.s32.totalorder %s17, 0
    %p119 = por %p117, %p118
    %s121 = sadd.s32 %s120, 1
    %p124 = scmp.eq.s32.totalorder %s11, 1
    %p125 = scmp.ne.s32.totalorder %s120, %s122
    %p126 = scmp.eq.s32.totalorder %s11, 0
    %p127 = por %p125, %p126
    %p128 = scmp.ne.s32.totalorder %s120, %s122
    %p129 = scmp.eq.s32.totalorder %s16, 1
    %p130 = por %p128, %p129
    %p131 = scmp.ne.s32.totalorder %s122, %s123
    %p132 = scmp.eq.s32.totalorder %s16, 0
    %p133 = por %p131, %p132
    %p134 = scmp.ne.s32.totalorder %s122, %s123
    %p135 = scmp.eq.s32.totalorder %s17, 1
    %p136 = por %p134, %p135
    %p138 = scmp.ne.s32.totalorder %s123, %s137
    %p139 = scmp.eq.s32.totalorder %s17, 0
    %p140 = por %p138, %p139
    %s141 = ssub.s32 %s18, %s30
    %s142 = ssub.s32 %s19, %s26
    %s143 = sor.u32 %s141, %s142
    %p144 = scmp.eq.s32.totalorder %s143, 0
    %s146 = sadd.s32 %s145, 1
    %s147 = scalar_select %p144, %s145, %s146
    %p150 = pneg %p144
    %p151 = scmp.eq.s32.totalorder %s11, 1
    %p152 = por %p150, %p151
    %p153 = scmp.ne.s32.totalorder %s145, %s148
    %p154 = scmp.eq.s32.totalorder %s11, 0
    %p155 = por %p153, %p154
    %p156 = scmp.ne.s32.totalorder %s145, %s148
    %p157 = scmp.eq.s32.totalorder %s16, 1
    %p158 = por %p156, %p157
    %p159 = scmp.ne.s32.totalorder %s148, %s149
    %p160 = scmp.eq.s32.totalorder %s16, 0
    %p161 = por %p159, %p160
    %p162 = scmp.ne.s32.totalorder %s148, %s149
    %p163 = scmp.eq.s32.totalorder %s17, 1
    %p164 = por %p162, %p163
    %p166 = scmp.ne.s32.totalorder %s149, %s165
    %p167 = scmp.eq.s32.totalorder %s17, 0
    %p168 = por %p166, %p167
    %p169 = scmp.le.s32.totalorder 1, %s11
    %p170 = scmp.lt.s32.totalorder %s11, 3
    %p171 = pnand %p169, %p170
    %p172 = pneg %p171
    // Predicated region
    $region9: #{gcnn_forward.3} parent=5 // pred_check
      _
    $region10: #{gcnn_forward.3} parent=5 // pred_check_branch
      %174 = sbr.rel (%p171) target = $region12
    $region11: #{gcnn_forward.3} parent=5 // pred_region
      %s175 = ssub.s32 %s11, 1
      // Predicated region
      $region13: #{gcnn_forward.3} parent=11 // pred_check
        %p176 = pneg %p70
      $region14: #{gcnn_forward.3} parent=11 // pred_check_branch
        %178 = sbr.rel (%p176) target = $region16
      $region15: #{gcnn_forward.3} parent=11 // pred_region
        _
      $region16: #{gcnn_forward.3} parent=11 // pred_fallthru
        _
      // Predicated region
      $region17: #{gcnn_forward.3} parent=11 // pred_check
        %p179 = pneg %p91
      $region18: #{gcnn_forward.3} parent=11 // pred_check_branch
        %181 = sbr.rel (%p179) target = $region20
      $region19: #{gcnn_forward.3} parent=11 // pred_region
        _
      $region20: #{gcnn_forward.3} parent=11 // pred_fallthru
        _
      // Predicated region
      $region21: #{gcnn_forward.3} parent=11 // pred_check
        %p182 = pneg %p112
      $region22: #{gcnn_forward.3} parent=11 // pred_check_branch
        %184 = sbr.rel (%p182) target = $region24
      $region23: #{gcnn_forward.3} parent=11 // pred_region
        _
      $region24: #{gcnn_forward.3} parent=11 // pred_fallthru
        _
      // Predicated region
      $region25: #{gcnn_forward.3} parent=11 // pred_check
        %p185 = pneg %p133
      $region26: #{gcnn_forward.3} parent=11 // pred_check_branch
        %187 = sbr.rel (%p185) target = $region28
      $region27: #{gcnn_forward.3} parent=11 // pred_region
        _
      $region28: #{gcnn_forward.3} parent=11 // pred_fallthru
        _
    $region12: #{gcnn_forward.3} parent=5 // pred_fallthru
      _
    %p188 = scmp.lt.s32.totalorder %s11, 2
    // Predicated region
    $region29: #{gcnn_forward.3} parent=5 // pred_check
      %p189 = pneg %p188
    $region30: #{gcnn_forward.3} parent=5 // pred_check_branch
      %191 = sbr.rel (%p189) target = $region32
    $region31: #{gcnn_forward.3} parent=5 // pred_region
      // Predicated region
      $region33: #{gcnn_forward.3} parent=31 // pred_check
        %p192 = pneg %p43
      $region34: #{gcnn_forward.3} parent=31 // pred_check_branch
        %194 = sbr.rel (%p192) target = $region36
      $region35: #{gcnn_forward.3} parent=31 // pred_region
        %p195 = scmp.lt.s32.totalorder %s18, 1
        %s196 = scalar_select %p195, %s18, 1
        %s197 = smul.addr %s196, 8
        %s198 = smul.addr %s197, 4
        %s199 = scalar_lea.vmem %s0, %s198
      $region36: #{gcnn_forward.3} parent=31 // pred_fallthru
        _
    $region32: #{gcnn_forward.3} parent=5 // pred_fallthru
      _
    %p200 = scmp.le.s32.totalorder 1, %s11
    %p201 = scmp.lt.s32.totalorder %s11, 3
    %p202 = pnand %p200, %p201
    %p203 = pneg %p202
    // Predicated region
    $region37: #{gcnn_forward.3} parent=5 // pred_check
      _
    $region38: #{gcnn_forward.3} parent=5 // pred_check_branch
      %205 = sbr.rel (%p202) target = $region40
    $region39: #{gcnn_forward.3} parent=5 // pred_region
      %s206 = ssub.s32 %s11, 1
      %p207 = scmp.lt.s32.totalorder %s20, 1
      %s208 = scalar_select %p207, %s20, 1
      %s209 = smul.addr %s208, 8
      %s210 = smul.addr %s209, 4
      %s211 = scalar_lea.vmem %s0, %s210
      %p212 = pneg %p49
      %p213 = pneg %p46
      %p214 = pneg %p70
      %p215 = pneg %p67
      %p216 = pneg %p91
      %p217 = pneg %p88
      %p218 = pneg %p112
      %p219 = pneg %p109
      %p220 = pneg %p133
      %p221 = pneg %p130
      %p222 = pneg %p161
      %p223 = pneg %p158
      %p224 = scmp.lt.s32.totalorder %s20, 1
      %s225 = scalar_select %p224, %s20, 1
      %p226 = scmp.lt.s32.totalorder %s21, 0
      %s227 = scalar_select %p226, %s21, 0
      %s228 = sadd.s32 %s227, %s225
      %s229 = smul.addr %s228, 4
      %s230 = scalar_lea.vmem %s5, %s229
      %p231 = scmp.lt.s32.totalorder %s20, 1
      %s232 = scalar_select %p231, %s20, 1
      %s233 = smul.addr %s232, 8
      %s234 = smul.addr %s233, 4
      %s235 = scalar_lea.vmem %s0, %s234
      %p236 = scmp.lt.s32.totalorder %s20, 1
      %s237 = scalar_select %p236, %s20, 1
      %p238 = scmp.lt.s32.totalorder %s21, 0
      %s239 = scalar_select %p238, %s21, 0
      %s240 = sadd.s32 %s239, %s237
      %s241 = smul.addr %s240, 4
      %s242 = scalar_lea.vmem %s5, %s241
      %s244 = smul.u32 %s21, 8
      %s245 = sshra.s32 %s244, 3
      %s246 = sand.u32 %s244, 7
      %s247 = smul.u32 %s245, 4
      %s248 = smul.addr %s247, 4
      %s249 = scalar_lea.vmem %s235, %s248
      %v250 = vld [vmem:[%s249] sm:$0xff]
      %v251 = vld [vmem:[%s249 + $0x8] sm:$0xff]
      %v252 = vld [vmem:[%s249 + $0x10] sm:$0xff]
      %v253 = vld [vmem:[%s249 + $0x18] sm:$0xff]
      %v254 = vunpack.c.l.bf16 %v250
      %v255 = vunpack.c.h.bf16 %v250
      %v256 = vunpack.c.l.bf16 %v251
      %v257 = vunpack.c.h.bf16 %v251
      %v258 = vunpack.c.l.bf16 %v252
      %v259 = vunpack.c.h.bf16 %v252
      %v260 = vunpack.c.l.bf16 %v253
      %v261 = vunpack.c.h.bf16 %v253
      %v262 = vpack.c.bf16 %v254, %v254
      %v263 = vpack.c.bf16 %v255, %v255
      %v264 = vpack.c.bf16 %v256, %v256
      %v265 = vpack.c.bf16 %v257, %v257
      %v266 = vpack.c.bf16 %v258, %v254
      %v267 = vpack.c.bf16 %v259, %v255
      %v268 = vpack.c.bf16 %v260, %v256
      %v269 = vpack.c.bf16 %v261, %v257
      %v270 = vld [vmem:[%s1] sm:$0xf]
      %v271 = vld [vmem:[%s1 + $0x4] sm:$0xf]
      %v272 = vld [vmem:[%s1 + $0x8] sm:$0xf]
      %v273 = vld [vmem:[%s1 + $0xc] sm:$0xf]
      %v274 = vld [vmem:[%s1 + $0x10] sm:$0xf]
      %v275 = vld [vmem:[%s1 + $0x14] sm:$0xf]
      %v276 = vld [vmem:[%s1 + $0x18] sm:$0xf]
      %v277 = vld [vmem:[%s1 + $0x1c] sm:$0xf]
      %v278 = vld [vmem:[%s1 + $0x20] sm:$0xf]
      %v279 = vld [vmem:[%s1 + $0x24] sm:$0xf]
      %v280 = vld [vmem:[%s1 + $0x28] sm:$0xf]
      %v281 = vld [vmem:[%s1 + $0x2c] sm:$0xf]
      %v282 = vld [vmem:[%s1 + $0x30] sm:$0xf]
      %v283 = vld [vmem:[%s1 + $0x34] sm:$0xf]
      %v284 = vld [vmem:[%s1 + $0x38] sm:$0xf]
      %v285 = vld [vmem:[%s1 + $0x3c] sm:$0xf]
      %v286 = vld [vmem:[%s1 + $0x40] sm:$0xf]
      %v287 = vld [vmem:[%s1 + $0x44] sm:$0xf]
      %v288 = vld [vmem:[%s1 + $0x48] sm:$0xf]
      %v289 = vld [vmem:[%s1 + $0x4c] sm:$0xf]
      %v290 = vld [vmem:[%s1 + $0x50] sm:$0xf]
      %v291 = vld [vmem:[%s1 + $0x54] sm:$0xf]
      %v292 = vld [vmem:[%s1 + $0x58] sm:$0xf]
      %v293 = vld [vmem:[%s1 + $0x5c] sm:$0xf]
      %v294 = vld [vmem:[%s1 + $0x60] sm:$0xf]
      %v295 = vld [vmem:[%s1 + $0x64] sm:$0xf]
      %v296 = vld [vmem:[%s1 + $0x68] sm:$0xf]
      %v297 = vld [vmem:[%s1 + $0x6c] sm:$0xf]
      %v298 = vld [vmem:[%s1 + $0x70] sm:$0xf]
      %v299 = vld [vmem:[%s1 + $0x74] sm:$0xf]
      %v300 = vld [vmem:[%s1 + $0x78] sm:$0xf]
      %v301 = vld [vmem:[%s1 + $0x7c] sm:$0xf]
      %v302 = vld [vmem:[%s1 + $0x80] sm:$0xf]
      %v303 = vld [vmem:[%s1 + $0x84] sm:$0xf]
      %v304 = vld [vmem:[%s1 + $0x88] sm:$0xf]
      %v305 = vld [vmem:[%s1 + $0x8c] sm:$0xf]
      %v306 = vld [vmem:[%s1 + $0x90] sm:$0xf]
      %v307 = vld [vmem:[%s1 + $0x94] sm:$0xf]
      %v308 = vld [vmem:[%s1 + $0x98] sm:$0xf]
      %v309 = vld [vmem:[%s1 + $0x9c] sm:$0xf]
      %v310 = vld [vmem:[%s1 + $0xa0] sm:$0xf]
      %v311 = vld [vmem:[%s1 + $0xa4] sm:$0xf]
      %v312 = vld [vmem:[%s1 + $0xa8] sm:$0xf]
      %v313 = vld [vmem:[%s1 + $0xac] sm:$0xf]
      %v314 = vld [vmem:[%s1 + $0xb0] sm:$0xf]
      %v315 = vld [vmem:[%s1 + $0xb4] sm:$0xf]
      %v316 = vld [vmem:[%s1 + $0xb8] sm:$0xf]
      %v317 = vld [vmem:[%s1 + $0xbc] sm:$0xf]
      %v318 = vld [vmem:[%s1 + $0xc0] sm:$0xf]
      %v319 = vld [vmem:[%s1 + $0xc4] sm:$0xf]
      %v320 = vld [vmem:[%s1 + $0xc8] sm:$0xf]
      %v321 = vld [vmem:[%s1 + $0xcc] sm:$0xf]
      %v322 = vld [vmem:[%s1 + $0xd0] sm:$0xf]
      %v323 = vld [vmem:[%s1 + $0xd4] sm:$0xf]
      %v324 = vld [vmem:[%s1 + $0xd8] sm:$0xf]
      %v325 = vld [vmem:[%s1 + $0xdc] sm:$0xf]
      %v326 = vld [vmem:[%s2] sm:$0xf]
      %v327 = vld [vmem:[%s2 + $0x4] sm:$0xf]
      %v328 = vld [vmem:[%s2 + $0x8] sm:$0xf]
      %v329 = vld [vmem:[%s2 + $0xc] sm:$0xf]
      %v330 = vld [vmem:[%s2 + $0x10] sm:$0xf]
      %v331 = vld [vmem:[%s2 + $0x14] sm:$0xf]
      %v332 = vld [vmem:[%s2 + $0x18] sm:$0xf]
      %v333 = vld [vmem:[%s2 + $0x1c] sm:$0xf]
      %v334 = vld [vmem:[%s2 + $0x20] sm:$0xf]
      %v335 = vld [vmem:[%s2 + $0x24] sm:$0xf]
      %v336 = vld [vmem:[%s2 + $0x28] sm:$0xf]
      %v337 = vld [vmem:[%s2 + $0x2c] sm:$0xf]
      %v338 = vld [vmem:[%s2 + $0x30] sm:$0xf]
      %v339 = vld [vmem:[%s2 + $0x34] sm:$0xf]
      %v340 = vld [vmem:[%s2 + $0x38] sm:$0xf]
      %v341 = vld [vmem:[%s2 + $0x3c] sm:$0xf]
      %v342 = vld [vmem:[%s2 + $0x40] sm:$0xf]
      %v343 = vld [vmem:[%s2 + $0x44] sm:$0xf]
      %v344 = vld [vmem:[%s2 + $0x48] sm:$0xf]
      %v345 = vld [vmem:[%s2 + $0x4c] sm:$0xf]
      %v346 = vld [vmem:[%s2 + $0x50] sm:$0xf]
      %v347 = vld [vmem:[%s2 + $0x54] sm:$0xf]
      %v348 = vld [vmem:[%s2 + $0x58] sm:$0xf]
      %v349 = vld [vmem:[%s2 + $0x5c] sm:$0xf]
      %v350 = vld [vmem:[%s2 + $0x60] sm:$0xf]
      %v351 = vld [vmem:[%s2 + $0x64] sm:$0xf]
      %v352 = vld [vmem:[%s2 + $0x68] sm:$0xf]
      %v353 = vld [vmem:[%s2 + $0x6c] sm:$0xf]
      %v354 = vld [vmem:[%s2 + $0x70] sm:$0xf]
      %v355 = vld [vmem:[%s2 + $0x74] sm:$0xf]
      %v356 = vld [vmem:[%s2 + $0x78] sm:$0xf]
      %v357 = vld [vmem:[%s2 + $0x7c] sm:$0xf]
      %v358 = vld [vmem:[%s2 + $0x80] sm:$0xf]
      %v359 = vld [vmem:[%s2 + $0x84] sm:$0xf]
      %v360 = vld [vmem:[%s2 + $0x88] sm:$0xf]
      %v361 = vld [vmem:[%s2 + $0x8c] sm:$0xf]
      %v362 = vld [vmem:[%s2 + $0x90] sm:$0xf]
      %v363 = vld [vmem:[%s2 + $0x94] sm:$0xf]
      %v364 = vld [vmem:[%s2 + $0x98] sm:$0xf]
      %v365 = vld [vmem:[%s2 + $0x9c] sm:$0xf]
      %v366 = vld [vmem:[%s2 + $0xa0] sm:$0xf]
      %v367 = vld [vmem:[%s2 + $0xa4] sm:$0xf]
      %v368 = vld [vmem:[%s2 + $0xa8] sm:$0xf]
      %v369 = vld [vmem:[%s2 + $0xac] sm:$0xf]
      %v370 = vld [vmem:[%s2 + $0xb0] sm:$0xf]
      %v371 = vld [vmem:[%s2 + $0xb4] sm:$0xf]
      %v372 = vld [vmem:[%s2 + $0xb8] sm:$0xf]
      %v373 = vld [vmem:[%s2 + $0xbc] sm:$0xf]
      %v374 = vld [vmem:[%s2 + $0xc0] sm:$0xf]
      %v375 = vld [vmem:[%s2 + $0xc4] sm:$0xf]
      %v376 = vld [vmem:[%s2 + $0xc8] sm:$0xf]
      %v377 = vld [vmem:[%s2 + $0xcc] sm:$0xf]
      %v378 = vld [vmem:[%s2 + $0xd0] sm:$0xf]
      %v379 = vld [vmem:[%s2 + $0xd4] sm:$0xf]
      %v380 = vld [vmem:[%s2 + $0xd8] sm:$0xf]
      %v381 = vld [vmem:[%s2 + $0xdc] sm:$0xf]
      %v383 = vshrl.u32 %v266, 16
      %v385 = vshll.u32 %v266, 16
      %v387 = vrot.slane %v385, 1
      %v388 = vor.u32 %v383, %v387
      %v390 = vshrl.u32 %v267, 16
      %v392 = vshll.u32 %v267, 16
      %v394 = vrot.slane %v392, 1
      %v395 = vor.u32 %v390, %v394
      %v397 = vshrl.u32 %v268, 16
      %v399 = vshll.u32 %v268, 16
      %v401 = vrot.slane %v399, 1
      %v402 = vor.u32 %v397, %v401
      %v404 = vshrl.u32 %v269, 16
      %v406 = vshll.u32 %v269, 16
      %v408 = vrot.slane %v406, 1
      %v409 = vor.u32 %v404, %v408
      %v469 = vunpack.c.l.b16 %v326
      %v470 = vunpack.c.l.b16 %v327
      %v471 = vunpack.c.l.b16 %v328
      %v472 = vunpack.c.l.b16 %v329
      %v473 = vunpack.c.l.b16 %v330
      %v474 = vunpack.c.l.b16 %v331
      %v475 = vunpack.c.l.b16 %v332
      %v476 = vunpack.c.l.b16 %v333
      %v477 = vunpack.c.l.b16 %v334
      %v478 = vunpack.c.l.b16 %v335
      %v479 = vunpack.c.l.b16 %v336
      %v480 = vunpack.c.l.b16 %v337
      %v481 = vunpack.c.l.b16 %v338
      %v482 = vunpack.c.l.b16 %v339
      %v483 = vunpack.c.l.b16 %v340
      %v484 = vunpack.c.l.b16 %v341
      %v485 = vunpack.c.l.b16 %v342
      %v486 = vunpack.c.l.b16 %v343
      %v487 = vunpack.c.l.b16 %v344
      %v488 = vunpack.c.l.b16 %v345
      %v489 = vunpack.c.l.b16 %v346
      %v490 = vunpack.c.l.b16 %v347
      %v491 = vunpack.c.l.b16 %v348
      %v492 = vunpack.c.l.b16 %v349
      %v493 = vunpack.c.l.b16 %v350
      %v494 = vunpack.c.l.b16 %v351
      %v495 = vunpack.c.l.b16 %v352
      %v496 = vunpack.c.l.b16 %v353
      %v497 = vunpack.c.l.b16 %v354
      %v498 = vunpack.c.l.b16 %v355
      %v499 = vunpack.c.l.b16 %v356
      %v500 = vunpack.c.l.b16 %v357
      %v501 = vunpack.c.l.b16 %v358
      %v502 = vunpack.c.l.b16 %v359
      %v503 = vunpack.c.l.b16 %v360
      %v504 = vunpack.c.l.b16 %v361
      %v505 = vunpack.c.l.b16 %v362
      %v506 = vunpack.c.l.b16 %v363
      %v507 = vunpack.c.l.b16 %v364
      %v508 = vunpack.c.l.b16 %v365
      %v509 = vunpack.c.l.b16 %v366
      %v510 = vunpack.c.l.b16 %v367
      %v511 = vunpack.c.l.b16 %v368
      %v512 = vunpack.c.l.b16 %v369
      %v513 = vunpack.c.l.b16 %v370
      %v514 = vunpack.c.l.b16 %v371
      %v515 = vunpack.c.l.b16 %v372
      %v516 = vunpack.c.l.b16 %v373
      %v517 = vunpack.c.l.b16 %v374
      %v518 = vunpack.c.l.b16 %v375
      %v519 = vunpack.c.l.b16 %v376
      %v520 = vunpack.c.l.b16 %v377
      %v521 = vunpack.c.l.b16 %v378
      %v522 = vunpack.c.l.b16 %v379
      %v523 = vunpack.c.l.b16 %v380
      %v524 = vunpack.c.l.b16 %v381
      %v525 = vpack.c.b16 %v470, %v469
      %v526 = vpack.c.b16 %v472, %v471
      %v527 = vpack.c.b16 %v474, %v473
      %v528 = vpack.c.b16 %v476, %v475
      %v529 = vpack.c.b16 %v478, %v477
      %v530 = vpack.c.b16 %v480, %v479
      %v531 = vpack.c.b16 %v482, %v481
      %v532 = vpack.c.b16 %v484, %v483
      %v533 = vpack.c.b16 %v486, %v485
      %v534 = vpack.c.b16 %v488, %v487
      %v535 = vpack.c.b16 %v490, %v489
      %v536 = vpack.c.b16 %v492, %v491
      %v537 = vpack.c.b16 %v494, %v493
      %v538 = vpack.c.b16 %v496, %v495
      %v539 = vpack.c.b16 %v498, %v497
      %v540 = vpack.c.b16 %v500, %v499
      %v541 = vpack.c.b16 %v502, %v501
      %v542 = vpack.c.b16 %v504, %v503
      %v543 = vpack.c.b16 %v506, %v505
      %v544 = vpack.c.b16 %v508, %v507
      %v545 = vpack.c.b16 %v510, %v509
      %v546 = vpack.c.b16 %v512, %v511
      %v547 = vpack.c.b16 %v514, %v513
      %v548 = vpack.c.b16 %v516, %v515
      %v549 = vpack.c.b16 %v518, %v517
      %v550 = vpack.c.b16 %v520, %v519
      %v551 = vpack.c.b16 %v522, %v521
      %v552 = vpack.c.b16 %v524, %v523
      %vm581 = vcmask 523264
      %v583 = vsel %vm581, %v409, 0
      %585 = vmatpush.bf16.msra.mxu0 %v532
      %586 = vmatpush.bf16.msra.mxu0 %v531
      %587 = vmatpush.bf16.msra.mxu0 %v530
      %588 = vmatpush.bf16.msra.mxu0 %v529
      %589 = vmatpush.bf16.msra.mxu0 %v528
      %590 = vmatpush.bf16.msra.mxu0 %v527
      %591 = vmatpush.bf16.msra.mxu0 %v526
      %592 = vmatpush.bf16.msra.mxu0 %v525
      %593 = vmatmul.bf16.gmra.mxu0 %v388
      %v594 = vpop.f32.mrf.mxu0
      %v595 = vadd.f32 0.0, %v594
      %v596 = vpop.f32.mrf.mxu0
      %597 = vdwg.mxu0
      %598 = vmatpush.bf16.msra.mxu0 %v540
      %599 = vmatpush.bf16.msra.mxu0 %v539
      %600 = vmatpush.bf16.msra.mxu0 %v538
      %601 = vmatpush.bf16.msra.mxu0 %v537
      %602 = vmatpush.bf16.msra.mxu0 %v536
      %603 = vmatpush.bf16.msra.mxu0 %v535
      %604 = vmatpush.bf16.msra.mxu0 %v534
      %605 = vmatpush.bf16.msra.mxu0 %v533
      %606 = vmatmul.bf16.gmra.mxu0 %v395
      %v607 = vpop.f32.mrf.mxu0
      %v608 = vadd.f32 %v595, %v607
      %v609 = vpop.f32.mrf.mxu0
      %610 = vdwg.mxu0
      %611 = vmatpush.bf16.msra.mxu0 %v548
      %612 = vmatpush.bf16.msra.mxu0 %v547
      %613 = vmatpush.bf16.msra.mxu0 %v546
      %614 = vmatpush.bf16.msra.mxu0 %v545
      %615 = vmatpush.bf16.msra.mxu0 %v544
      %616 = vmatpush.bf16.msra.mxu0 %v543
      %617 = vmatpush.bf16.msra.mxu0 %v542
      %618 = vmatpush.bf16.msra.mxu0 %v541
      %619 = vmatmul.bf16.gmra.mxu0 %v402
      %v620 = vpop.f32.mrf.mxu0
      %v621 = vadd.f32 %v608, %v620
      %v622 = vpop.f32.mrf.mxu0
      %623 = vdwg.mxu0
      %624 = vmatpush.bf16.msra.mxu0 0
      %625 = vmatpush.bf16.msra.mxu0 0
      %626 = vmatpush.bf16.msra.mxu0 0
      %627 = vmatpush.bf16.msra.mxu0 0
      %628 = vmatpush.bf16.msra.mxu0 %v552
      %629 = vmatpush.bf16.msra.mxu0 %v551
      %630 = vmatpush.bf16.msra.mxu0 %v550
      %631 = vmatpush.bf16.msra.mxu0 %v549
      %632 = vmatmul.bf16.gmra.mxu0 %v583
      %v633 = vpop.f32.mrf.mxu0
      %v634 = vadd.f32 %v621, %v633
      %v635 = vpop.f32.mrf.mxu0
      %636 = vdwg.mxu0
      %v693 = vunpack.c.l.b16 %v270
      %v694 = vunpack.c.l.b16 %v271
      %v695 = vunpack.c.l.b16 %v272
      %v696 = vunpack.c.l.b16 %v273
      %v697 = vunpack.c.l.b16 %v274
      %v698 = vunpack.c.l.b16 %v275
      %v699 = vunpack.c.l.b16 %v276
      %v700 = vunpack.c.l.b16 %v277
      %v701 = vunpack.c.l.b16 %v278
      %v702 = vunpack.c.l.b16 %v279
      %v703 = vunpack.c.l.b16 %v280
      %v704 = vunpack.c.l.b16 %v281
      %v705 = vunpack.c.l.b16 %v282
      %v706 = vunpack.c.l.b16 %v283
      %v707 = vunpack.c.l.b16 %v284
      %v708 = vunpack.c.l.b16 %v285
      %v709 = vunpack.c.l.b16 %v286
      %v710 = vunpack.c.l.b16 %v287
      %v711 = vunpack.c.l.b16 %v288
      %v712 = vunpack.c.l.b16 %v289
      %v713 = vunpack.c.l.b16 %v290
      %v714 = vunpack.c.l.b16 %v291
      %v715 = vunpack.c.l.b16 %v292
      %v716 = vunpack.c.l.b16 %v293
      %v717 = vunpack.c.l.b16 %v294
      %v718 = vunpack.c.l.b16 %v295
      %v719 = vunpack.c.l.b16 %v296
      %v720 = vunpack.c.l.b16 %v297
      %v721 = vunpack.c.l.b16 %v298
      %v722 = vunpack.c.l.b16 %v299
      %v723 = vunpack.c.l.b16 %v300
      %v724 = vunpack.c.l.b16 %v301
      %v725 = vunpack.c.l.b16 %v302
      %v726 = vunpack.c.l.b16 %v303
      %v727 = vunpack.c.l.b16 %v304
      %v728 = vunpack.c.l.b16 %v305
      %v729 = vunpack.c.l.b16 %v306
      %v730 = vunpack.c.l.b16 %v307
      %v731 = vunpack.c.l.b16 %v308
      %v732 = vunpack.c.l.b16 %v309
      %v733 = vunpack.c.l.b16 %v310
      %v734 = vunpack.c.l.b16 %v311
      %v735 = vunpack.c.l.b16 %v312
      %v736 = vunpack.c.l.b16 %v313
      %v737 = vunpack.c.l.b16 %v314
      %v738 = vunpack.c.l.b16 %v315
      %v739 = vunpack.c.l.b16 %v316
      %v740 = vunpack.c.l.b16 %v317
      %v741 = vunpack.c.l.b16 %v318
      %v742 = vunpack.c.l.b16 %v319
      %v743 = vunpack.c.l.b16 %v320
      %v744 = vunpack.c.l.b16 %v321
      %v745 = vunpack.c.l.b16 %v322
      %v746 = vunpack.c.l.b16 %v323
      %v747 = vunpack.c.l.b16 %v324
      %v748 = vunpack.c.l.b16 %v325
      %v749 = vpack.c.b16 %v694, %v693
      %v750 = vpack.c.b16 %v696, %v695
      %v751 = vpack.c.b16 %v698, %v697
      %v752 = vpack.c.b16 %v700, %v699
      %v753 = vpack.c.b16 %v702, %v701
      %v754 = vpack.c.b16 %v704, %v703
      %v755 = vpack.c.b16 %v706, %v705
      %v756 = vpack.c.b16 %v708, %v707
      %v757 = vpack.c.b16 %v710, %v709
      %v758 = vpack.c.b16 %v712, %v711
      %v759 = vpack.c.b16 %v714, %v713
      %v760 = vpack.c.b16 %v716, %v715
      %v761 = vpack.c.b16 %v718, %v717
      %v762 = vpack.c.b16 %v720, %v719
      %v763 = vpack.c.b16 %v722, %v721
      %v764 = vpack.c.b16 %v724, %v723
      %v765 = vpack.c.b16 %v726, %v725
      %v766 = vpack.c.b16 %v728, %v727
      %v767 = vpack.c.b16 %v730, %v729
      %v768 = vpack.c.b16 %v732, %v731
      %v769 = vpack.c.b16 %v734, %v733
      %v770 = vpack.c.b16 %v736, %v735
      %v771 = vpack.c.b16 %v738, %v737
      %v772 = vpack.c.b16 %v740, %v739
      %v773 = vpack.c.b16 %v742, %v741
      %v774 = vpack.c.b16 %v744, %v743
      %v775 = vpack.c.b16 %v746, %v745
      %v776 = vpack.c.b16 %v748, %v747
      %v806 = vsel %vm581, %v265, 0
      %808 = vmatpush.bf16.msra.mxu0 %v756
      %809 = vmatpush.bf16.msra.mxu0 %v755
      %810 = vmatpush.bf16.msra.mxu0 %v754
      %811 = vmatpush.bf16.msra.mxu0 %v753
      %812 = vmatpush.bf16.msra.mxu0 %v752
      %813 = vmatpush.bf16.msra.mxu0 %v751
      %814 = vmatpush.bf16.msra.mxu0 %v750
      %815 = vmatpush.bf16.msra.mxu0 %v749
      %816 = vmatmul.bf16.gmra.mxu0 %v262
      %v817 = vpop.f32.mrf.mxu0
      %v818 = vadd.f32 %v634, %v817
      %v819 = vpop.f32.mrf.mxu0
      %820 = vdwg.mxu0
      %821 = vmatpush.bf16.msra.mxu0 %v764
      %822 = vmatpush.bf16.msra.mxu0 %v763
      %823 = vmatpush.bf16.msra.mxu0 %v762
      %824 = vmatpush.bf16.msra.mxu0 %v761
      %825 = vmatpush.bf16.msra.mxu0 %v760
      %826 = vmatpush.bf16.msra.mxu0 %v759
      %827 = vmatpush.bf16.msra.mxu0 %v758
      %828 = vmatpush.bf16.msra.mxu0 %v757
      %829 = vmatmul.bf16.gmra.mxu0 %v263
      %v830 = vpop.f32.mrf.mxu0
      %v831 = vadd.f32 %v818, %v830
      %v832 = vpop.f32.mrf.mxu0
      %833 = vdwg.mxu0
      %834 = vmatpush.bf16.msra.mxu0 %v772
      %835 = vmatpush.bf16.msra.mxu0 %v771
      %836 = vmatpush.bf16.msra.mxu0 %v770
      %837 = vmatpush.bf16.msra.mxu0 %v769
      %838 = vmatpush.bf16.msra.mxu0 %v768
      %839 = vmatpush.bf16.msra.mxu0 %v767
      %840 = vmatpush.bf16.msra.mxu0 %v766
      %841 = vmatpush.bf16.msra.mxu0 %v765
      %842 = vmatmul.bf16.gmra.mxu0 %v264
      %v843 = vpop.f32.mrf.mxu0
      %v844 = vadd.f32 %v831, %v843
      %v845 = vpop.f32.mrf.mxu0
      %846 = vdwg.mxu0
      %847 = vmatpush.bf16.msra.mxu0 0
      %848 = vmatpush.bf16.msra.mxu0 0
      %849 = vmatpush.bf16.msra.mxu0 0
      %850 = vmatpush.bf16.msra.mxu0 0
      %851 = vmatpush.bf16.msra.mxu0 %v776
      %852 = vmatpush.bf16.msra.mxu0 %v775
      %853 = vmatpush.bf16.msra.mxu0 %v774
      %854 = vmatpush.bf16.msra.mxu0 %v773
      %855 = vmatmul.bf16.gmra.mxu0 %v806
      %v856 = vpop.f32.mrf.mxu0
      %v857 = vadd.f32 %v844, %v856
      %v858 = vpop.f32.mrf.mxu0
      %859 = vdwg.mxu0
      %v860 = vld [vmem:[%s3] sm:$0xf]
      %v861 = vld [vmem:[%s3 + $0x4] sm:$0xf]
      %v862 = vld [vmem:[%s3 + $0x8] sm:$0xf]
      %v863 = vld [vmem:[%s3 + $0xc] sm:$0xf]
      %v864 = vld [vmem:[%s3 + $0x10] sm:$0xf]
      %v865 = vld [vmem:[%s3 + $0x14] sm:$0xf]
      %v866 = vld [vmem:[%s3 + $0x18] sm:$0xf]
      %v867 = vld [vmem:[%s3 + $0x1c] sm:$0xf]
      %v869 = vrot.slane %v266, 1
      %v878 = vunpack.c.l.b16 %v860
      %v879 = vunpack.c.l.b16 %v861
      %v880 = vunpack.c.l.b16 %v862
      %v881 = vunpack.c.l.b16 %v863
      %v882 = vunpack.c.l.b16 %v864
      %v883 = vunpack.c.l.b16 %v865
      %v884 = vunpack.c.l.b16 %v866
      %v885 = vunpack.c.l.b16 %v867
      %v886 = vpack.c.b16 %v879, %v878
      %v887 = vpack.c.b16 %v881, %v880
      %v888 = vpack.c.b16 %v883, %v882
      %v889 = vpack.c.b16 %v885, %v884
      %v895 = vsel %vm581, %v869, 0
      %897 = vmatpush.bf16.msra.mxu0 0
      %898 = vmatpush.bf16.msra.mxu0 0
      %899 = vmatpush.bf16.msra.mxu0 0
      %900 = vmatpush.bf16.msra.mxu0 0
      %901 = vmatpush.bf16.msra.mxu0 %v889
      %902 = vmatpush.bf16.msra.mxu0 %v888
      %903 = vmatpush.bf16.msra.mxu0 %v887
      %904 = vmatpush.bf16.msra.mxu0 %v886
      %905 = vmatmul.bf16.gmra.mxu0 %v895
      %v906 = vpop.f32.mrf.mxu0
      %v907 = vadd.f32 0.0, %v906
      %v908 = vpop.f32.mrf.mxu0
      %909 = vdwg.mxu0
      %v910 = vadd.f32 %v857, %v907
      %v911 = vld [vmem:[%s4] sm:$0x1]
      %v913 = vperm.slane %v911, 0
      %v915 = vadd.f32 %v910, %v913
      %v916 = vxor.u32 %v915, 2147483648
      %v917 = vmul.f32 %v916, 1.442695
      %v918 = vpow.pop %v917
      %v919 = vadd.f32 %v918, 1.0
      %v920 = vrcp.pop %v919
      %v921 = vmul.f32 %v919, %v920
      %v922 = vsub.f32 1.0, %v921
      %v923 = vmul.f32 %v920, %v922
      %v924 = vadd.f32 %v920, %v923
      %vm925 = vweird.f32 %v919
      %vm926 = vweird.f32 %v920
      %vm927 = vmor %vm925, %vm926
      %v928 = vsel %vm927, %v920, %v924
      %v929 = vand.u32 2147483647, %v919
      %vm930 = vcmp.eq.f32.partialorder %v929, 8.507059e+37
      %v931 = vand.u32 %v919, 2147483648
      %v932 = vor.u32 1.1754944e-38, %v931
      %v933 = vsel %vm930, %v932, %v928
      %v934 = vmul.f32 1.0, %v933
      %936 = vrot.lane.b32.xlu0 %v934, 64
      %v937 = vpop.permute.xlu0 %936
      %v939 = vmul.f32 %v915, %v937
      %v940 = vpack.c.bf16 %v939, %v939
      %vm941 = vcmask 519168
      %942 = vst.msk [vmem:[%s242] sm:$0xf] %vm941, %v940
      %p943 = scmp.lt.s32.totalorder %s20, 1
      %s944 = scalar_select %p943, %s20, 1
      %p945 = scmp.lt.s32.totalorder %s21, 0
      %s946 = scalar_select %p945, %s21, 0
      %s947 = sadd.s32 %s946, %s944
      %s948 = smul.addr %s947, 4
      %s949 = scalar_lea.vmem %s5, %s948
      // Predicated region
      $region41: #{gcnn_forward.3} parent=39 // pred_check
        %p950 = pneg %p158
      $region42: #{gcnn_forward.3} parent=39 // pred_check_branch
        %952 = sbr.rel (%p950) target = $region44
      $region43: #{gcnn_forward.3} parent=39 // pred_region
        _
      $region44: #{gcnn_forward.3} parent=39 // pred_fallthru
        _
    $region40: #{gcnn_forward.3} parent=5 // pred_fallthru
      _
    %p953 = scmp.le.s32.totalorder 2, %s11
    // Predicated region
    $region45: #{gcnn_forward.3} parent=5 // pred_check
      %p954 = pneg %p953
    $region46: #{gcnn_forward.3} parent=5 // pred_check_branch
      %956 = sbr.rel (%p954) target = $region48
    $region47: #{gcnn_forward.3} parent=5 // pred_region
      %s957 = ssub.s32 %s11, 2
      // Predicated region
      $region49: #{gcnn_forward.3} parent=47 // pred_check
        %p958 = pneg %p164
      $region50: #{gcnn_forward.3} parent=47 // pred_check_branch
        %960 = sbr.rel (%p958) target = $region52
      $region51: #{gcnn_forward.3} parent=47 // pred_region
        %p961 = scmp.lt.s32.totalorder %s22, 1
        %s962 = scalar_select %p961, %s22, 1
        %p963 = scmp.lt.s32.totalorder %s23, 0
        %s964 = scalar_select %p963, %s23, 0
        %s965 = sadd.s32 %s964, %s962
        %s966 = smul.addr %s965, 4
        %s967 = scalar_lea.vmem %s5, %s966
      $region52: #{gcnn_forward.3} parent=47 // pred_fallthru
        _
    $region48: #{gcnn_forward.3} parent=5 // pred_fallthru
      _
  $region6: #{gcnn_forward.3} parent=0 // loop_footer
    %s15 = sadd.s32 1, %s11
  $region7: #{gcnn_forward.3} parent=0 // loop_footer_branch
    %10 = sbr.rel target = $region3
  $region8: #{gcnn_forward.3} parent=0 // loop_exit
    _

</llo_original>
